<compile_context>
chip_gen: v5e
topology: v5e:2x2
jax: 0.10.0
libtpu: 0.0.40
codegen_flags: <defaults>
</compile_context>

<pallas_src>
import functools

import jax
import jax.numpy as jnp
from jax import lax
from jax.experimental import pallas as pl
from jax.experimental.pallas import tpu as pltpu


def _conv3x3_relu_kernel(x_ref, w_ref, b_ref, o_ref, acc_ref, *, TH, W, Cin, Cout_p):
    # x_ref:   (1, 1, TH+2, W+2, Cin)   bf16 padded / halo'd input strip
    # w_ref:   (3, 3*Cin, Cout_p)       bf16 weights, kw folded into K
    # b_ref:   (1, Cout_p)              f32 bias (Cout padded to Cout_p lanes)
    # o_ref:   (1, TH*W, Cout_p)        lane-dense output slab
    # acc_ref: (TH*W, Cout_p)           f32 VMEM accumulator
    acc_ref[...] = jnp.broadcast_to(b_ref[...], (TH * W, Cout_p))
    for kh in range(3):
        # Fold the 3 kw taps into the contraction dim: lhs is (TH*W, 3*Cin)
        # with K index = kw*Cin + cin, matching w_ref[kh]'s (kw, cin) merge.
        lhs = jnp.concatenate(
            [x_ref[0, 0, kh:kh + TH, kw:kw + W, :] for kw in range(3)], axis=-1
        ).reshape(TH * W, 3 * Cin)
        acc_ref[...] += jnp.dot(lhs, w_ref[kh], preferred_element_type=jnp.float32)
    o_ref[0] = jnp.maximum(acc_ref[...], 0.0).astype(o_ref.dtype)


def _pick_row_tile(H, W, Cin, Cout_p, *, vmem_budget_bytes=12 * 2**20, max_rows=2048):
    """Largest TH dividing H with TH*W a multiple of 8 that fits the VMEM budget."""
    best = None
    for th in range(1, H + 1):
        if H % th or (th * W) % 8 or th * W > max_rows:
            continue
        est = (2 * (th + 2) * (W + 2) * Cin * 2      # input strip, bf16, double-buffered
               + 2 * th * W * Cout_p * 4             # output slab, f32, double-buffered
               + th * W * Cout_p * 4                 # f32 accumulator scratch
               + 2 * 9 * Cin * Cout_p * 2            # folded weights, bf16
               + 2 * Cout_p * 4)                     # bias
        if est <= vmem_budget_bytes:
            best = th
    return best if best is not None else H           # fall back to full image


def conv3x3_relu_nhwc(x_nhwc, weight_hwio, bias, *, row_tile=None,
                      compute_dtype=jnp.bfloat16):
    """Same-padded 3x3 conv (stride 1) + ReLU.  NHWC activations, HWIO weights."""
    N, H, W, Cin = x_nhwc.shape
    Cout = weight_hwio.shape[-1]
    Cout_p = max(128, ((Cout + 127) // 128) * 128)   # lane-dense output channels
    out_dtype = x_nhwc.dtype

    TH = row_tile if row_tile is not None else _pick_row_tile(H, W, Cin, Cout_p)
    if H % TH:
        raise ValueError(f"row_tile={TH} must divide H={H}")
    nH = H // TH

    # Zero-pad spatial dims by 1 (padding = kernel_size // 2), cast to bf16.
    x_pad = jnp.pad(x_nhwc.astype(compute_dtype), ((0, 0), (1, 1), (1, 1), (0, 0)))
    # Overlapping row strips with a 1-row halo on each side:
    # (N, nH, TH+2, W+2, Cin).  Duplication is only 2 rows per TH rows; plain
    # Blocked BlockSpecs keep Pallas' automatic double-buffering intact.
    rows = jnp.arange(nH)[:, None] * TH + jnp.arange(TH + 2)[None, :]
    x_tiles = x_pad[:, rows]

    # Weights: HWIO -> (kh, kw*Cin, Cout_p), bf16, Cout padded for dense lanes.
    w = jnp.pad(weight_hwio.astype(compute_dtype),
                ((0, 0), (0, 0), (0, 0), (0, Cout_p - Cout)))
    w_folded = w.reshape(3, 3 * Cin, Cout_p)
    b_p = jnp.pad(bias.astype(jnp.float32), (0, Cout_p - Cout)).reshape(1, Cout_p)

    kernel = functools.partial(_conv3x3_relu_kernel, TH=TH, W=W, Cin=Cin, Cout_p=Cout_p)

    out = pl.pallas_call(
        kernel,
        out_shape=jax.ShapeDtypeStruct((N, H * W, Cout_p), out_dtype),
        grid_spec=pltpu.PrefetchScalarGridSpec(
            num_scalar_prefetch=0,
            grid=(N, nH),
            in_specs=[
                pl.BlockSpec((1, 1, TH + 2, W + 2, Cin), lambda n, h: (n, h, 0, 0, 0)),
                pl.BlockSpec((3, 3 * Cin, Cout_p), lambda n, h: (0, 0, 0)),
                pl.BlockSpec((1, Cout_p), lambda n, h: (0, 0)),
            ],
            out_specs=pl.BlockSpec((1, TH * W, Cout_p), lambda n, h: (n, h, 0)),
            scratch_shapes=[pltpu.VMEM((TH * W, Cout_p), jnp.float32)],
        ),
        compiler_params=pltpu.CompilerParams(
            # Both axes independent -> megacore sharding on v7x even when N == 1.
            dimension_semantics=("parallel", "parallel"),
            # Explicit scoped-VMEM cap: above v5e's 16 MiB default, within v7x's 64 MiB.
            vmem_limit_bytes=32 * 1024 * 1024,
        ),
    )(x_tiles, w_folded, b_p)

    # Lane-dense (N, H*W, Cout_p) slab -> (N, H, W, Cout); slice off channel pad.
    return out[:, :, :Cout].reshape(N, H, W, Cout)


def conv_layer_forward(x_nchw, weight_hwio, bias, *, row_tile=None,
                       compute_dtype=jnp.bfloat16):
    """ConvLayer forward, PyTorch layouts: NCHW in -> NCHW out.

    NOTE: inside a full RDN, chain conv3x3_relu_nhwc directly and keep
    activations NHWC so the NCHW<->NHWC transposes happen once per network.
    """
    x_nhwc = jnp.transpose(x_nchw, (0, 2, 3, 1))
    out_nhwc = conv3x3_relu_nhwc(x_nhwc, weight_hwio, bias,
                                 row_tile=row_tile, compute_dtype=compute_dtype)
    return jnp.transpose(out_nhwc, (0, 3, 1, 2))


if __name__ == "__main__":
    key = jax.random.PRNGKey(0)
    k_x, k_w, k_b = jax.random.split(key, 3)

    N, Cin, Cout, H, W = 2, 4, 8, 16, 16

    x = jax.random.normal(k_x, (N, Cin, H, W), dtype=jnp.float32)
    # Deterministic synthetic parameters (Conv2d(in_c, out_c, 3, 1, padding=1, bias=True)).
    fan_in = Cin * 3 * 3
    bound = 1.0 / jnp.sqrt(jnp.float32(fan_in))
    weight = jax.random.uniform(k_w, (3, 3, Cin, Cout), jnp.float32, -bound, bound)
    bias = jax.random.uniform(k_b, (Cout,), jnp.float32, -bound, bound)

    # row_tile=8 -> grid=(N, 2): exercises the halo'd row-tiling path.
    out = conv_layer_forward(x, weight, bias, row_tile=8)
    out = jax.block_until_ready(out)

    # Reference check (f32) against XLA's conv; kernel uses bf16 operands with
    # f32 accumulation, so tolerance reflects bf16 input/weight quantization.
    w_oihw = jnp.transpose(weight, (3, 2, 0, 1))
    ref = lax.conv_general_dilated(
        x, w_oihw, window_strides=(1, 1), padding="SAME",
        dimension_numbers=("NCHW", "OIHW", "NCHW"),
    ) + bias.reshape(1, Cout, 1, 1)
    ref = jnp.maximum(ref, 0.0)

    assert out.shape == (N, Cout, H, W)
    assert jnp.allclose(out, ref, atol=2e-2, rtol=2e-2), \
        float(jnp.max(jnp.abs(out - ref)))

    print("KERNEL_OK")
</pallas_src>

<mosaic_0001>
module attributes {stable_mosaic.version = 11 : i64} {
  func.func @_conv3x3_relu_kernel(%arg0: i32, %arg1: i32, %arg2: memref<1x1x10x18x4xbf16, #tpu.memory_space<vmem>>, %arg3: memref<3x12x128xbf16, #tpu.memory_space<vmem>>, %arg4: memref<1x128xf32, #tpu.memory_space<vmem>>, %arg5: memref<1x128x128xf32, #tpu.memory_space<vmem>>, %arg6: memref<128x128xf32, #tpu.memory_space<vmem>>) attributes {dimension_semantics = [#tpu.dimension_semantics<parallel>, #tpu.dimension_semantics<parallel>], iteration_bounds = array<i64: 2, 2>, scalar_prefetch = 0 : i64, scratch_operands = 1 : i64, tpu.core_type = #tpu.core_type<tc>, window_params = [{transform_indices = @transform_0, window_bounds = array<i64: 1, 1, 10, 18, 4>}, {pipeline_mode = #tpu.pipeline_mode<synchronous>, transform_indices = @transform_1, window_bounds = array<i64: 3, 12, 128>}, {pipeline_mode = #tpu.pipeline_mode<synchronous>, transform_indices = @transform_2, window_bounds = array<i64: 1, 128>}, {transform_indices = @transform_3, window_bounds = array<i64: 1, 128, 128>}]} {
    %c0 = arith.constant 0 : index
    %c0_0 = arith.constant 0 : index
    %0 = vector.load %arg4[%c0, %c0_0] : memref<1x128xf32, #tpu.memory_space<vmem>>, vector<1x128xf32>
    %1 = vector.shape_cast %0 : vector<1x128xf32> to vector<1x128xf32>
    %2 = vector.broadcast %1 : vector<1x128xf32> to vector<128x128xf32>
    %c0_1 = arith.constant 0 : index
    %c0_2 = arith.constant 0 : index
    %3 = vector.load %arg6[%c0_1, %c0_2] : memref<128x128xf32, #tpu.memory_space<vmem>>, vector<128x128xf32>
    tpu.vector_store %arg6[%c0_1, %c0_2], %2 {strides = array<i32>} : memref<128x128xf32, #tpu.memory_space<vmem>>, vector<128x128xf32>,
    %c0_3 = arith.constant 0 : index
    %c0_4 = arith.constant 0 : index
    %c0_5 = arith.constant 0 : index
    %c0_6 = arith.constant 0 : index
    %c0_7 = arith.constant 0 : index
    %4 = vector.load %arg2[%c0_3, %c0_4, %c0_5, %c0_6, %c0_7] : memref<1x1x10x18x4xbf16, #tpu.memory_space<vmem>>, vector<1x1x8x16x4xbf16>
    %5 = vector.shape_cast %4 : vector<1x1x8x16x4xbf16> to vector<8x16x4xbf16>
    %c0_8 = arith.constant 0 : index
    %c0_9 = arith.constant 0 : index
    %c0_10 = arith.constant 0 : index
    %c1 = arith.constant 1 : index
    %c0_11 = arith.constant 0 : index
    %6 = vector.load %arg2[%c0_8, %c0_9, %c0_10, %c1, %c0_11] : memref<1x1x10x18x4xbf16, #tpu.memory_space<vmem>>, vector<1x1x8x16x4xbf16>
    %7 = vector.shape_cast %6 : vector<1x1x8x16x4xbf16> to vector<8x16x4xbf16>
    %c0_12 = arith.constant 0 : index
    %c0_13 = arith.constant 0 : index
    %c0_14 = arith.constant 0 : index
    %c2 = arith.constant 2 : index
    %c0_15 = arith.constant 0 : index
    %8 = vector.load %arg2[%c0_12, %c0_13, %c0_14, %c2, %c0_15] : memref<1x1x10x18x4xbf16, #tpu.memory_space<vmem>>, vector<1x1x8x16x4xbf16>
    %9 = vector.shape_cast %8 : vector<1x1x8x16x4xbf16> to vector<8x16x4xbf16>
    %10 = tpu.concatenate %5, %7, %9 in 2 : vector<8x16x4xbf16>, vector<8x16x4xbf16>, vector<8x16x4xbf16> -> vector<8x16x12xbf16>
    %11 = vector.shape_cast %10 : vector<8x16x12xbf16> to vector<128x12xbf16>
    %c0_16 = arith.constant 0 : index
    %c0_17 = arith.constant 0 : index
    %12 = vector.load %arg6[%c0_16, %c0_17] : memref<128x128xf32, #tpu.memory_space<vmem>>, vector<128x128xf32>
    %c0_18 = arith.constant 0 : index
    %c0_19 = arith.constant 0 : index
    %c0_20 = arith.constant 0 : index
    %13 = vector.load %arg3[%c0_18, %c0_19, %c0_20] : memref<3x12x128xbf16, #tpu.memory_space<vmem>>, vector<1x12x128xbf16>
    %14 = vector.shape_cast %13 : vector<1x12x128xbf16> to vector<12x128xbf16>
    %cst = arith.constant dense<0.000000e+00> : vector<128x128xf32>
    %15 = tpu.matmul %11, %14, %cst {dimension_numbers = #tpu.dot_dimension_numbers<[1], [0], [0], [1], [0, 0, 1, 1], [], []>} : vector<128x12xbf16>, vector<12x128xbf16>, vector<128x128xf32> -> vector<128x128xf32>
    %16 = arith.addf %12, %15 : vector<128x128xf32>
    %c0_21 = arith.constant 0 : index
    %c0_22 = arith.constant 0 : index
    %17 = vector.load %arg6[%c0_21, %c0_22] : memref<128x128xf32, #tpu.memory_space<vmem>>, vector<128x128xf32>
    tpu.vector_store %arg6[%c0_21, %c0_22], %16 {strides = array<i32>} : memref<128x128xf32, #tpu.memory_space<vmem>>, vector<128x128xf32>,
    %c0_23 = arith.constant 0 : index
    %c0_24 = arith.constant 0 : index
    %c1_25 = arith.constant 1 : index
    %c0_26 = arith.constant 0 : index
    %c0_27 = arith.constant 0 : index
    %18 = vector.load %arg2[%c0_23, %c0_24, %c1_25, %c0_26, %c0_27] : memref<1x1x10x18x4xbf16, #tpu.memory_space<vmem>>, vector<1x1x8x16x4xbf16>
    %19 = vector.shape_cast %18 : vector<1x1x8x16x4xbf16> to vector<8x16x4xbf16>
    %c0_28 = arith.constant 0 : index
    %c0_29 = arith.constant 0 : index
    %c1_30 = arith.constant 1 : index
    %c1_31 = arith.constant 1 : index
    %c0_32 = arith.constant 0 : index
    %20 = vector.load %arg2[%c0_28, %c0_29, %c1_30, %c1_31, %c0_32] : memref<1x1x10x18x4xbf16, #tpu.memory_space<vmem>>, vector<1x1x8x16x4xbf16>
    %21 = vector.shape_cast %20 : vector<1x1x8x16x4xbf16> to vector<8x16x4xbf16>
    %c0_33 = arith.constant 0 : index
    %c0_34 = arith.constant 0 : index
    %c1_35 = arith.constant 1 : index
    %c2_36 = arith.constant 2 : index
    %c0_37 = arith.constant 0 : index
    %22 = vector.load %arg2[%c0_33, %c0_34, %c1_35, %c2_36, %c0_37] : memref<1x1x10x18x4xbf16, #tpu.memory_space<vmem>>, vector<1x1x8x16x4xbf16>
    %23 = vector.shape_cast %22 : vector<1x1x8x16x4xbf16> to vector<8x16x4xbf16>
    %24 = tpu.concatenate %19, %21, %23 in 2 : vector<8x16x4xbf16>, vector<8x16x4xbf16>, vector<8x16x4xbf16> -> vector<8x16x12xbf16>
    %25 = vector.shape_cast %24 : vector<8x16x12xbf16> to vector<128x12xbf16>
    %c0_38 = arith.constant 0 : index
    %c0_39 = arith.constant 0 : index
    %26 = vector.load %arg6[%c0_38, %c0_39] : memref<128x128xf32, #tpu.memory_space<vmem>>, vector<128x128xf32>
    %c1_40 = arith.constant 1 : index
    %c0_41 = arith.constant 0 : index
    %c0_42 = arith.constant 0 : index
    %27 = vector.load %arg3[%c1_40, %c0_41, %c0_42] : memref<3x12x128xbf16, #tpu.memory_space<vmem>>, vector<1x12x128xbf16>
    %28 = vector.shape_cast %27 : vector<1x12x128xbf16> to vector<12x128xbf16>
    %cst_43 = arith.constant dense<0.000000e+00> : vector<128x128xf32>
    %29 = tpu.matmul %25, %28, %cst_43 {dimension_numbers = #tpu.dot_dimension_numbers<[1], [0], [0], [1], [0, 0, 1, 1], [], []>} : vector<128x12xbf16>, vector<12x128xbf16>, vector<128x128xf32> -> vector<128x128xf32>
    %30 = arith.addf %26, %29 : vector<128x128xf32>
    %c0_44 = arith.constant 0 : index
    %c0_45 = arith.constant 0 : index
    %31 = vector.load %arg6[%c0_44, %c0_45] : memref<128x128xf32, #tpu.memory_space<vmem>>, vector<128x128xf32>
    tpu.vector_store %arg6[%c0_44, %c0_45], %30 {strides = array<i32>} : memref<128x128xf32, #tpu.memory_space<vmem>>, vector<128x128xf32>,
    %c0_46 = arith.constant 0 : index
    %c0_47 = arith.constant 0 : index
    %c2_48 = arith.constant 2 : index
    %c0_49 = arith.constant 0 : index
    %c0_50 = arith.constant 0 : index
    %32 = vector.load %arg2[%c0_46, %c0_47, %c2_48, %c0_49, %c0_50] : memref<1x1x10x18x4xbf16, #tpu.memory_space<vmem>>, vector<1x1x8x16x4xbf16>
    %33 = vector.shape_cast %32 : vector<1x1x8x16x4xbf16> to vector<8x16x4xbf16>
    %c0_51 = arith.constant 0 : index
    %c0_52 = arith.constant 0 : index
    %c2_53 = arith.constant 2 : index
    %c1_54 = arith.constant 1 : index
    %c0_55 = arith.constant 0 : index
    %34 = vector.load %arg2[%c0_51, %c0_52, %c2_53, %c1_54, %c0_55] : memref<1x1x10x18x4xbf16, #tpu.memory_space<vmem>>, vector<1x1x8x16x4xbf16>
    %35 = vector.shape_cast %34 : vector<1x1x8x16x4xbf16> to vector<8x16x4xbf16>
    %c0_56 = arith.constant 0 : index
    %c0_57 = arith.constant 0 : index
    %c2_58 = arith.constant 2 : index
    %c2_59 = arith.constant 2 : index
    %c0_60 = arith.constant 0 : index
    %36 = vector.load %arg2[%c0_56, %c0_57, %c2_58, %c2_59, %c0_60] : memref<1x1x10x18x4xbf16, #tpu.memory_space<vmem>>, vector<1x1x8x16x4xbf16>
    %37 = vector.shape_cast %36 : vector<1x1x8x16x4xbf16> to vector<8x16x4xbf16>
    %38 = tpu.concatenate %33, %35, %37 in 2 : vector<8x16x4xbf16>, vector<8x16x4xbf16>, vector<8x16x4xbf16> -> vector<8x16x12xbf16>
    %39 = vector.shape_cast %38 : vector<8x16x12xbf16> to vector<128x12xbf16>
    %c0_61 = arith.constant 0 : index
    %c0_62 = arith.constant 0 : index
    %40 = vector.load %arg6[%c0_61, %c0_62] : memref<128x128xf32, #tpu.memory_space<vmem>>, vector<128x128xf32>
    %c2_63 = arith.constant 2 : index
    %c0_64 = arith.constant 0 : index
    %c0_65 = arith.constant 0 : index
    %41 = vector.load %arg3[%c2_63, %c0_64, %c0_65] : memref<3x12x128xbf16, #tpu.memory_space<vmem>>, vector<1x12x128xbf16>
    %42 = vector.shape_cast %41 : vector<1x12x128xbf16> to vector<12x128xbf16>
    %cst_66 = arith.constant dense<0.000000e+00> : vector<128x128xf32>
    %43 = tpu.matmul %39, %42, %cst_66 {dimension_numbers = #tpu.dot_dimension_numbers<[1], [0], [0], [1], [0, 0, 1, 1], [], []>} : vector<128x12xbf16>, vector<12x128xbf16>, vector<128x128xf32> -> vector<128x128xf32>
    %44 = arith.addf %40, %43 : vector<128x128xf32>
    %c0_67 = arith.constant 0 : index
    %c0_68 = arith.constant 0 : index
    %45 = vector.load %arg6[%c0_67, %c0_68] : memref<128x128xf32, #tpu.memory_space<vmem>>, vector<128x128xf32>
    tpu.vector_store %arg6[%c0_67, %c0_68], %44 {strides = array<i32>} : memref<128x128xf32, #tpu.memory_space<vmem>>, vector<128x128xf32>,
    %c0_69 = arith.constant 0 : index
    %c0_70 = arith.constant 0 : index
    %46 = vector.load %arg6[%c0_69, %c0_70] : memref<128x128xf32, #tpu.memory_space<vmem>>, vector<128x128xf32>
    %cst_71 = arith.constant 0.000000e+00 : f32
    %47 = vector.broadcast %cst_71 : f32 to vector<128x128xf32>
    %48 = arith.maximumf %46, %47 : vector<128x128xf32>
    %c0_72 = arith.constant 0 : index
    %c0_73 = arith.constant 0 : index
    %c0_74 = arith.constant 0 : index
    %49 = vector.load %arg5[%c0_72, %c0_73, %c0_74] : memref<1x128x128xf32, #tpu.memory_space<vmem>>, vector<1x128x128xf32>
    %50 = vector.shape_cast %49 : vector<1x128x128xf32> to vector<128x128xf32>
    %51 = vector.shape_cast %48 : vector<128x128xf32> to vector<1x128x128xf32>
    tpu.vector_store %arg5[%c0_72, %c0_73, %c0_74], %51 {strides = array<i32>} : memref<1x128x128xf32, #tpu.memory_space<vmem>>, vector<1x128x128xf32>,
    return
  }
  func.func @transform_0(%arg0: i32, %arg1: i32) -> (i32, i32, i32, i32, i32) {
    %c0_i32 = arith.constant 0 : i32
    %c0_i32_0 = arith.constant 0 : i32
    %c0_i32_1 = arith.constant 0 : i32
    %c0_i32_2 = arith.constant 0 : i32
    return %arg0, %arg1, %c0_i32, %c0_i32_0, %c0_i32_1 : i32, i32, i32, i32, i32
  }
  func.func @transform_1(%arg0: i32, %arg1: i32) -> (i32, i32, i32) {
    %c0_i32 = arith.constant 0 : i32
    %c0_i32_0 = arith.constant 0 : i32
    %c0_i32_1 = arith.constant 0 : i32
    %c0_i32_2 = arith.constant 0 : i32
    return %c0_i32, %c0_i32_0, %c0_i32_1 : i32, i32, i32
  }
  func.func @transform_2(%arg0: i32, %arg1: i32) -> (i32, i32) {
    %c0_i32 = arith.constant 0 : i32
    %c0_i32_0 = arith.constant 0 : i32
    %c0_i32_1 = arith.constant 0 : i32
    return %c0_i32, %c0_i32_0 : i32, i32
  }
  func.func @transform_3(%arg0: i32, %arg1: i32) -> (i32, i32, i32) {
    %c0_i32 = arith.constant 0 : i32
    %c0_i32_0 = arith.constant 0 : i32
    return %arg0, %arg1, %c0_i32 : i32, i32, i32
  }
}

</mosaic_0001>

<llo_original>
// kernel: tpu_custom_call.1
$region0: #{tpu_custom_call.1}
  #allocation0 [shape = 'u32[]', space=smem, size = 0x4, offset = 0x4, fixed_abs, tag = 'smem constant byte address 0x4 - core index']
  #allocation1 [shape = 'u32[72,128]{1,0:T(1,128)}', space=vmem, size = 0x9000, scoped, tag = 'internal scratch']
  #allocation2 [shape = 'f32[128,128]{1,0:T(8,128)}', space=vmem, size = 0x10000, scoped, tag = 'scratch operand']
  %s0 = inlined_call_operand.vmem [shape: bf16[2,2,10,18,4], index: 0, kind: input, shape index: {}]
  %s1 = inlined_call_operand.vmem [shape: bf16[3,12,128], index: 1, kind: input, shape index: {}]
  %s2 = inlined_call_operand.vmem [shape: f32[1,128], index: 2, kind: input, shape index: {}]
  %s3 = inlined_call_operand.hbm [shape: f32[2,256,128], index: 3, kind: output, shape index: {}]
  %s4 = sld [smem:[#allocation0]]
  $region45: #{tpu_custom_call.1} parent=0
    _
  %s6 = ssub.s32 1, %s4
  %s7 = scalar_select 0, %s6, %s4
  $region1: #{tpu_custom_call.1} parent=0
    #allocation3 [shape = 'u8[131072]{0}', space=vmem, size = 0x20000, scoped, tag = 'output window, operand 0']
    #allocation4 [shape = 's32[2]{0}', space=sflag, size = 0x8, scoped, tag = 'scoped memory for tpu_custom_call.1']
    %8 = vsyncpa [#allocation4], 0
    %s9 = scalar_lea.sflag [#allocation4], 1
    %10 = vsyncpa %s9, 0
    loop: start=0, step=1, limit=6
    $region2: #{tpu_custom_call.1} parent=1 // loop_pre_header
      _
    $region3: #{tpu_custom_call.1} parent=1 // loop_header
      %s12 = sphi 0, %s16
      %p13 = scmp.ge.s32.totalorder %s12, 6
      %s19 = sphi 0, %s31
      %s20 = sphi 0, %s27
      %s21 = sphi 0, %s19
      %s22 = sphi 0, %s20
      %s23 = sphi 0, %s21
      %s24 = sphi 0, %s22
      %s36 = sphi 0, %s38
      %s39 = sphi 0, %s36
      %s40 = sphi 0, %s39
      %s56 = sphi 0, %s40
      %s60 = sphi 0, %s60
      %s62 = sphi 0, %s60
      %s63 = sphi 0, %s62
      %s77 = sphi 0, %s63
      %s81 = sphi 0, %s81
      %s83 = sphi 0, %s81
      %s84 = sphi 0, %s83
      %s98 = sphi 0, %s84
      %s106 = sphi 0, %s108
      %s109 = sphi 0, %s106
      %s110 = sphi 0, %s109
      %s126 = sphi 0, %s110
    $region4: #{tpu_custom_call.1} parent=1 // loop_header_branch
      %15 = sbr.rel (%p13) target = $region8
    $region5: #{tpu_custom_call.1} parent=1 // loop_body
      %s17 = ssub.s32 %s12, 1
      %s18 = ssub.s32 %s12, 2
      %s25 = sadd.s32 1, %s20
      %p26 = scmp.ge.s32.totalorder %s25, 2
      %s27 = scalar_select %p26, 0, %s25
      %s28 = sadd.s32 1, %s19
      %s29 = scalar_select %p26, %s28, %s19
      %p30 = scmp.ge.s32.totalorder %s29, 2
      %s31 = scalar_select %p30, 0, %s29
      %s32 = ssub.s32 %s19, %s31
      %s33 = ssub.s32 %s20, %s27
      %s34 = sor.u32 %s32, %s33
      %p35 = scmp.eq.s32.totalorder %s34, 0
      %s37 = sadd.s32 %s36, 1
      %s38 = scalar_select %p35, %s36, %s37
      %p41 = pneg %p35
      %p42 = scmp.eq.s32.totalorder %s12, 3
      %p43 = por %p41, %p42
      %p44 = scmp.ne.s32.totalorder %s36, %s39
      %p45 = scmp.eq.s32.totalorder %s12, 0
      %p46 = por %p44, %p45
      %p47 = scmp.ne.s32.totalorder %s36, %s39
      %p48 = scmp.eq.s32.totalorder %s17, 3
      %p49 = por %p47, %p48
      %p50 = scmp.ne.s32.totalorder %s39, %s40
      %p51 = scmp.eq.s32.totalorder %s17, 0
      %p52 = por %p50, %p51
      %p53 = scmp.ne.s32.totalorder %s39, %s40
      %p54 = scmp.eq.s32.totalorder %s18, 3
      %p55 = por %p53, %p54
      %p57 = scmp.ne.s32.totalorder %s40, %s56
      %p58 = scmp.eq.s32.totalorder %s18, 0
      %p59 = por %p57, %p58
      %s61 = sadd.s32 %s60, 1
      %p64 = scmp.eq.s32.totalorder %s12, 3
      %p65 = scmp.ne.s32.totalorder %s60, %s62
      %p66 = scmp.eq.s32.totalorder %s12, 0
      %p67 = por %p65, %p66
      %p68 = scmp.ne.s32.totalorder %s60, %s62
      %p69 = scmp.eq.s32.totalorder %s17, 3
      %p70 = por %p68, %p69
      %p71 = scmp.ne.s32.totalorder %s62, %s63
      %p72 = scmp.eq.s32.totalorder %s17, 0
      %p73 = por %p71, %p72
      %p74 = scmp.ne.s32.totalorder %s62, %s63
      %p75 = scmp.eq.s32.totalorder %s18, 3
      %p76 = por %p74, %p75
      %p78 = scmp.ne.s32.totalorder %s63, %s77
      %p79 = scmp.eq.s32.totalorder %s18, 0
      %p80 = por %p78, %p79
      %s82 = sadd.s32 %s81, 1
      %p85 = scmp.eq.s32.totalorder %s12, 3
      %p86 = scmp.ne.s32.totalorder %s81, %s83
      %p87 = scmp.eq.s32.totalorder %s12, 0
      %p88 = por %p86, %p87
      %p89 = scmp.ne.s32.totalorder %s81, %s83
      %p90 = scmp.eq.s32.totalorder %s17, 3
      %p91 = por %p89, %p90
      %p92 = scmp.ne.s32.totalorder %s83, %s84
      %p93 = scmp.eq.s32.totalorder %s17, 0
      %p94 = por %p92, %p93
      %p95 = scmp.ne.s32.totalorder %s83, %s84
      %p96 = scmp.eq.s32.totalorder %s18, 3
      %p97 = por %p95, %p96
      %p99 = scmp.ne.s32.totalorder %s84, %s98
      %p100 = scmp.eq.s32.totalorder %s18, 0
      %p101 = por %p99, %p100
      %s102 = ssub.s32 %s19, %s31
      %s103 = ssub.s32 %s20, %s27
      %s104 = sor.u32 %s102, %s103
      %p105 = scmp.eq.s32.totalorder %s104, 0
      %s107 = sadd.s32 %s106, 1
      %s108 = scalar_select %p105, %s106, %s107
      %p111 = pneg %p105
      %p112 = scmp.eq.s32.totalorder %s12, 3
      %p113 = por %p111, %p112
      %p114 = scmp.ne.s32.totalorder %s106, %s109
      %p115 = scmp.eq.s32.totalorder %s12, 0
      %p116 = por %p114, %p115
      %p117 = scmp.ne.s32.totalorder %s106, %s109
      %p118 = scmp.eq.s32.totalorder %s17, 3
      %p119 = por %p117, %p118
      %p120 = scmp.ne.s32.totalorder %s109, %s110
      %p121 = scmp.eq.s32.totalorder %s17, 0
      %p122 = por %p120, %p121
      %p123 = scmp.ne.s32.totalorder %s109, %s110
      %p124 = scmp.eq.s32.totalorder %s18, 3
      %p125 = por %p123, %p124
      %p127 = scmp.ne.s32.totalorder %s110, %s126
      %p128 = scmp.eq.s32.totalorder %s18, 0
      %p129 = por %p127, %p128
      %p130 = scmp.le.s32.totalorder 1, %s12
      %p131 = scmp.lt.s32.totalorder %s12, 5
      %p132 = pnand %p130, %p131
      %p133 = pneg %p132
      // Predicated region
      $region9: #{tpu_custom_call.1} parent=5 // pred_check
        _
      $region10: #{tpu_custom_call.1} parent=5 // pred_check_branch
        %135 = sbr.rel (%p132) target = $region12
      $region11: #{tpu_custom_call.1} parent=5 // pred_region
        %s136 = ssub.s32 %s12, 1
        // Predicated region
        $region13: #{tpu_custom_call.1} parent=11 // pred_check
          %p137 = pneg %p73
        $region14: #{tpu_custom_call.1} parent=11 // pred_check_branch
          %139 = sbr.rel (%p137) target = $region16
        $region15: #{tpu_custom_call.1} parent=11 // pred_region
          _
        $region16: #{tpu_custom_call.1} parent=11 // pred_fallthru
          _
        // Predicated region
        $region17: #{tpu_custom_call.1} parent=11 // pred_check
          %p140 = pneg %p94
        $region18: #{tpu_custom_call.1} parent=11 // pred_check_branch
          %142 = sbr.rel (%p140) target = $region20
        $region19: #{tpu_custom_call.1} parent=11 // pred_region
          _
        $region20: #{tpu_custom_call.1} parent=11 // pred_fallthru
          _
      $region12: #{tpu_custom_call.1} parent=5 // pred_fallthru
        _
      %p143 = scmp.lt.s32.totalorder %s12, 4
      // Predicated region
      $region21: #{tpu_custom_call.1} parent=5 // pred_check
        %p144 = pneg %p143
      $region22: #{tpu_custom_call.1} parent=5 // pred_check_branch
        %146 = sbr.rel (%p144) target = $region24
      $region23: #{tpu_custom_call.1} parent=5 // pred_region
        // Predicated region
        $region25: #{tpu_custom_call.1} parent=23 // pred_check
          %p147 = pneg %p46
        $region26: #{tpu_custom_call.1} parent=23 // pred_check_branch
          %149 = sbr.rel (%p147) target = $region28
        $region27: #{tpu_custom_call.1} parent=23 // pred_region
          %p150 = scmp.lt.s32.totalorder %s19, 1
          %s151 = scalar_select %p150, %s19, 1
          %p152 = scmp.lt.s32.totalorder %s20, 1
          %s153 = scalar_select %p152, %s20, 1
          %s154 = smul.addr %s153, 30
          %s155 = smul.addr %s151, 60
          %s156 = sadd.s32 %s154, %s155
          %s157 = smul.addr %s156, 4
          %s158 = scalar_lea.vmem %s0, %s157
        $region28: #{tpu_custom_call.1} parent=23 // pred_fallthru
          _
      $region24: #{tpu_custom_call.1} parent=5 // pred_fallthru
        _
      %p159 = scmp.le.s32.totalorder 1, %s12
      %p160 = scmp.lt.s32.totalorder %s12, 5
      %p161 = pnand %p159, %p160
      %p162 = pneg %p161
      // Predicated region
      $region29: #{tpu_custom_call.1} parent=5 // pred_check
        _
      $region30: #{tpu_custom_call.1} parent=5 // pred_check_branch
        %164 = sbr.rel (%p161) target = $region32
      $region31: #{tpu_custom_call.1} parent=5 // pred_region
        %s165 = ssub.s32 %s12, 1
        %p166 = scmp.lt.s32.totalorder %s21, 1
        %s167 = scalar_select %p166, %s21, 1
        %p168 = scmp.lt.s32.totalorder %s22, 1
        %s169 = scalar_select %p168, %s22, 1
        %s170 = smul.addr %s169, 30
        %s171 = smul.addr %s167, 60
        %s172 = sadd.s32 %s170, %s171
        %s173 = smul.addr %s172, 4
        %s174 = scalar_lea.vmem %s0, %s173
        %p175 = pneg %p52
        %p176 = pneg %p49
        %p177 = pneg %p73
        %p178 = pneg %p70
        %p179 = pneg %p94
        %p180 = pneg %p91
        %p181 = pneg %p122
        %p182 = pneg %p119
        %s183 = sand.u32 %s109, 1
        %s184 = scalar_lea.sflag [#allocation4], %s183
        %s185 = sand.u32 %s109, 1
        %s186 = smul.addr %s185, 128
        %s187 = scalar_lea.vmem [#allocation3], %s186
        %p188 = scmp.lt.s32.totalorder %s21, 1
        %s189 = scalar_select %p188, %s21, 1
        %p190 = scmp.lt.s32.totalorder %s22, 1
        %s191 = scalar_select %p190, %s22, 1
        %s192 = smul.addr %s191, 30
        %s193 = smul.addr %s189, 60
        %s194 = sadd.s32 %s192, %s193
        %s195 = smul.addr %s194, 4
        %s196 = scalar_lea.vmem %s0, %s195
        %s197 = smul.u32 16, %s22
        %v199 = vld [vmem:[%s2] sm:$0x1]
        %v201 = vperm.slane %v199, 0
        %203 = vst [vmem:[#allocation2] sm:$0xff] %v201
        %204 = vst [vmem:[#allocation2 + $0x8] sm:$0xff] %v201
        %205 = vst [vmem:[#allocation2 + $0x10] sm:$0xff] %v201
        %206 = vst [vmem:[#allocation2 + $0x18] sm:$0xff] %v201
        %207 = vst [vmem:[#allocation2 + $0x20] sm:$0xff] %v201
        %208 = vst [vmem:[#allocation2 + $0x28] sm:$0xff] %v201
        %209 = vst [vmem:[#allocation2 + $0x30] sm:$0xff] %v201
        %210 = vst [vmem:[#allocation2 + $0x38] sm:$0xff] %v201
        %211 = vst [vmem:[#allocation2 + $0x40] sm:$0xff] %v201
        %212 = vst [vmem:[#allocation2 + $0x48] sm:$0xff] %v201
        %213 = vst [vmem:[#allocation2 + $0x50] sm:$0xff] %v201
        %214 = vst [vmem:[#allocation2 + $0x58] sm:$0xff] %v201
        %215 = vst [vmem:[#allocation2 + $0x60] sm:$0xff] %v201
        %216 = vst [vmem:[#allocation2 + $0x68] sm:$0xff] %v201
        %217 = vst [vmem:[#allocation2 + $0x70] sm:$0xff] %v201
        %218 = vst [vmem:[#allocation2 + $0x78] sm:$0xff] %v201
        %v219 = vld [vmem:[%s196] sm:$0xf]
        %v220 = vld [vmem:[%s196 + $0x4] sm:$0xf]
        %v221 = vld [vmem:[%s196 + $0xc] sm:$0xf]
        %v222 = vld [vmem:[%s196 + $0x10] sm:$0xf]
        %v223 = vld [vmem:[%s196 + $0x18] sm:$0xf]
        %v224 = vld [vmem:[%s196 + $0x1c] sm:$0xf]
        %v225 = vld [vmem:[%s196 + $0x24] sm:$0xf]
        %v226 = vld [vmem:[%s196 + $0x28] sm:$0xf]
        %v227 = vld [vmem:[%s196 + $0x30] sm:$0xf]
        %v228 = vld [vmem:[%s196 + $0x34] sm:$0xf]
        %v229 = vld [vmem:[%s196 + $0x3c] sm:$0xf]
        %v230 = vld [vmem:[%s196 + $0x40] sm:$0xf]
        %v231 = vld [vmem:[%s196 + $0x48] sm:$0xf]
        %v232 = vld [vmem:[%s196 + $0x4c] sm:$0xf]
        %v233 = vld [vmem:[%s196 + $0x54] sm:$0xf]
        %v234 = vld [vmem:[%s196 + $0x58] sm:$0xf]
        %v235 = vld [vmem:[%s196 + $0x8] sm:$0x1]
        %v236 = vld [vmem:[%s196 + $0x14] sm:$0x1]
        %v237 = vld [vmem:[%s196 + $0x20] sm:$0x1]
        %v238 = vld [vmem:[%s196 + $0x2c] sm:$0x1]
        %v239 = vld [vmem:[%s196 + $0x38] sm:$0x1]
        %v240 = vld [vmem:[%s196 + $0x44] sm:$0x1]
        %v241 = vld [vmem:[%s196 + $0x50] sm:$0x1]
        %v242 = vld [vmem:[%s196 + $0x5c] sm:$0x1]
        %v243 = vld [vmem:[%s196] sm:$0xe]
        %v244 = vld [vmem:[%s196 + $0xc] sm:$0xe]
        %v245 = vld [vmem:[%s196 + $0x18] sm:$0xe]
        %v246 = vld [vmem:[%s196 + $0x24] sm:$0xe]
        %v247 = vld [vmem:[%s196 + $0x30] sm:$0xe]
        %v248 = vld [vmem:[%s196 + $0x3c] sm:$0xe]
        %v249 = vld [vmem:[%s196 + $0x48] sm:$0xe]
        %v250 = vld [vmem:[%s196 + $0x54] sm:$0xe]
        %v267 = vunpack.c.l.b16 %v219
        %v268 = vunpack.c.l.b16 %v220
        %v269 = vunpack.c.l.b16 %v221
        %v270 = vunpack.c.l.b16 %v222
        %v271 = vunpack.c.l.b16 %v223
        %v272 = vunpack.c.l.b16 %v224
        %v273 = vunpack.c.l.b16 %v225
        %v274 = vunpack.c.l.b16 %v226
        %v275 = vunpack.c.l.b16 %v227
        %v276 = vunpack.c.l.b16 %v228
        %v277 = vunpack.c.l.b16 %v229
        %v278 = vunpack.c.l.b16 %v230
        %v279 = vunpack.c.l.b16 %v231
        %v280 = vunpack.c.l.b16 %v232
        %v281 = vunpack.c.l.b16 %v233
        %v282 = vunpack.c.l.b16 %v234
        %v283 = vpack.c.b16 %v268, %v267
        %v284 = vpack.c.b16 %v270, %v269
        %v285 = vpack.c.b16 %v272, %v271
        %v286 = vpack.c.b16 %v274, %v273
        %v287 = vpack.c.b16 %v276, %v275
        %v288 = vpack.c.b16 %v278, %v277
        %v289 = vpack.c.b16 %v280, %v279
        %v290 = vpack.c.b16 %v282, %v281
        %v299 = vunpack.c.l.b16 %v235
        %v300 = vunpack.c.l.b16 %v236
        %v301 = vunpack.c.l.b16 %v237
        %v302 = vunpack.c.l.b16 %v238
        %v303 = vunpack.c.l.b16 %v239
        %v304 = vunpack.c.l.b16 %v240
        %v305 = vunpack.c.l.b16 %v241
        %v306 = vunpack.c.l.b16 %v242
        %v307 = vpack.c.b16 %v299, %v299
        %v308 = vpack.c.b16 %v300, %v300
        %v309 = vpack.c.b16 %v301, %v301
        %v310 = vpack.c.b16 %v302, %v302
        %v311 = vpack.c.b16 %v303, %v303
        %v312 = vpack.c.b16 %v304, %v304
        %v313 = vpack.c.b16 %v305, %v305
        %v314 = vpack.c.b16 %v306, %v306
        %vm315 = vsmask.f32 7424
        %v317 = vshrl.u32 %v283, 16
        %v319 = vshll.u32 %v283, 16
        %v321 = vrot.slane %v319, 1
        %v322 = vor.u32 %v317, %v321
        %v324 = vshll.u32 %v307, 16
        %v326 = vrot.slane %v324, 1
        %v327 = vsel %vm315, %v322, %v326
        %v329 = vshrl.u32 %v284, 16
        %v331 = vshll.u32 %v284, 16
        %v333 = vrot.slane %v331, 1
        %v334 = vor.u32 %v329, %v333
        %v336 = vshll.u32 %v308, 16
        %v338 = vrot.slane %v336, 1
        %v339 = vsel %vm315, %v334, %v338
        %v341 = vshrl.u32 %v285, 16
        %v343 = vshll.u32 %v285, 16
        %v345 = vrot.slane %v343, 1
        %v346 = vor.u32 %v341, %v345
        %v348 = vshll.u32 %v309, 16
        %v350 = vrot.slane %v348, 1
        %v351 = vsel %vm315, %v346, %v350
        %v353 = vshrl.u32 %v286, 16
        %v355 = vshll.u32 %v286, 16
        %v357 = vrot.slane %v355, 1
        %v358 = vor.u32 %v353, %v357
        %v360 = vshll.u32 %v310, 16
        %v362 = vrot.slane %v360, 1
        %v363 = vsel %vm315, %v358, %v362
        %v365 = vshrl.u32 %v287, 16
        %v367 = vshll.u32 %v287, 16
        %v369 = vrot.slane %v367, 1
        %v370 = vor.u32 %v365, %v369
        %v372 = vshll.u32 %v311, 16
        %v374 = vrot.slane %v372, 1
        %v375 = vsel %vm315, %v370, %v374
        %v377 = vshrl.u32 %v288, 16
        %v379 = vshll.u32 %v288, 16
        %v381 = vrot.slane %v379, 1
        %v382 = vor.u32 %v377, %v381
        %v384 = vshll.u32 %v312, 16
        %v386 = vrot.slane %v384, 1
        %v387 = vsel %vm315, %v382, %v386
        %v389 = vshrl.u32 %v289, 16
        %v391 = vshll.u32 %v289, 16
        %v393 = vrot.slane %v391, 1
        %v394 = vor.u32 %v389, %v393
        %v396 = vshll.u32 %v313, 16
        %v398 = vrot.slane %v396, 1
        %v399 = vsel %vm315, %v394, %v398
        %v401 = vshrl.u32 %v290, 16
        %v403 = vshll.u32 %v290, 16
        %v405 = vrot.slane %v403, 1
        %v406 = vor.u32 %v401, %v405
        %v408 = vshll.u32 %v314, 16
        %v410 = vrot.slane %v408, 1
        %v411 = vsel %vm315, %v406, %v410
        %412 = vrot.lane.b32.xlu0 %v327, 4
        %v413 = vpop.permute.xlu0 %412
        %414 = vrot.lane.b32.xlu0 %v339, 4
        %v415 = vpop.permute.xlu0 %414
        %416 = vrot.lane.b32.xlu0 %v351, 4
        %v417 = vpop.permute.xlu0 %416
        %418 = vrot.lane.b32.xlu0 %v363, 4
        %v419 = vpop.permute.xlu0 %418
        %420 = vrot.lane.b32.xlu0 %v375, 4
        %v421 = vpop.permute.xlu0 %420
        %422 = vrot.lane.b32.xlu0 %v387, 4
        %v423 = vpop.permute.xlu0 %422
        %424 = vrot.lane.b32.xlu0 %v399, 4
        %v425 = vpop.permute.xlu0 %424
        %426 = vrot.lane.b32.xlu0 %v411, 4
        %v427 = vpop.permute.xlu0 %426
        %v436 = vunpack.c.l.b16 %v243
        %v437 = vunpack.c.l.b16 %v244
        %v438 = vunpack.c.l.b16 %v245
        %v439 = vunpack.c.l.b16 %v246
        %v440 = vunpack.c.l.b16 %v247
        %v441 = vunpack.c.l.b16 %v248
        %v442 = vunpack.c.l.b16 %v249
        %v443 = vunpack.c.l.b16 %v250
        %v444 = vpack.c.b16 %v268, %v436
        %v445 = vpack.c.b16 %v270, %v437
        %v446 = vpack.c.b16 %v272, %v438
        %v447 = vpack.c.b16 %v274, %v439
        %v448 = vpack.c.b16 %v276, %v440
        %v449 = vpack.c.b16 %v278, %v441
        %v450 = vpack.c.b16 %v280, %v442
        %v451 = vpack.c.b16 %v282, %v443
        %vm452 = vcmask 1046528
        %v453 = vrot.slane %v444, 1
        %v454 = vrot.slane %v307, 1
        %v455 = vsel %vm452, %v453, %v454
        %v456 = vrot.slane %v445, 1
        %v457 = vrot.slane %v308, 1
        %v458 = vsel %vm452, %v456, %v457
        %v459 = vrot.slane %v446, 1
        %v460 = vrot.slane %v309, 1
        %v461 = vsel %vm452, %v459, %v460
        %v462 = vrot.slane %v447, 1
        %v463 = vrot.slane %v310, 1
        %v464 = vsel %vm452, %v462, %v463
        %v465 = vrot.slane %v448, 1
        %v466 = vrot.slane %v311, 1
        %v467 = vsel %vm452, %v465, %v466
        %v468 = vrot.slane %v449, 1
        %v469 = vrot.slane %v312, 1
        %v470 = vsel %vm452, %v468, %v469
        %v471 = vrot.slane %v450, 1
        %v472 = vrot.slane %v313, 1
        %v473 = vsel %vm452, %v471, %v472
        %v474 = vrot.slane %v451, 1
        %v475 = vrot.slane %v314, 1
        %v476 = vsel %vm452, %v474, %v475
        %477 = vrot.lane.b32.xlu0 %v455, 8
        %v478 = vpop.permute.xlu0 %477
        %479 = vrot.lane.b32.xlu0 %v458, 8
        %v480 = vpop.permute.xlu0 %479
        %481 = vrot.lane.b32.xlu0 %v461, 8
        %v482 = vpop.permute.xlu0 %481
        %483 = vrot.lane.b32.xlu0 %v464, 8
        %v484 = vpop.permute.xlu0 %483
        %485 = vrot.lane.b32.xlu0 %v467, 8
        %v486 = vpop.permute.xlu0 %485
        %487 = vrot.lane.b32.xlu0 %v470, 8
        %v488 = vpop.permute.xlu0 %487
        %489 = vrot.lane.b32.xlu0 %v473, 8
        %v490 = vpop.permute.xlu0 %489
        %491 = vrot.lane.b32.xlu0 %v476, 8
        %v492 = vpop.permute.xlu0 %491
        %vm493 = vcmask 31744
        %v495 = vsel %vm493, %v283, %v413
        %v497 = vsel %vm493, %v284, %v415
        %v499 = vsel %vm493, %v285, %v417
        %v501 = vsel %vm493, %v286, %v419
        %v503 = vsel %vm493, %v287, %v421
        %v505 = vsel %vm493, %v288, %v423
        %v507 = vsel %vm493, %v289, %v425
        %v509 = vsel %vm493, %v290, %v427
        %vm510 = vcmask 64512
        %v512 = vsel %vm510, %v495, %v478
        %v514 = vsel %vm510, %v497, %v480
        %v516 = vsel %vm510, %v499, %v482
        %v518 = vsel %vm510, %v501, %v484
        %v520 = vsel %vm510, %v503, %v486
        %v522 = vsel %vm510, %v505, %v488
        %v524 = vsel %vm510, %v507, %v490
        %v526 = vsel %vm510, %v509, %v492
        %v527 = vld [vmem:[#allocation2] sm:$0xff]
        %v528 = vld [vmem:[#allocation2 + $0x8] sm:$0xff]
        %v529 = vld [vmem:[#allocation2 + $0x10] sm:$0xff]
        %v530 = vld [vmem:[#allocation2 + $0x18] sm:$0xff]
        %v531 = vld [vmem:[#allocation2 + $0x20] sm:$0xff]
        %v532 = vld [vmem:[#allocation2 + $0x28] sm:$0xff]
        %v533 = vld [vmem:[#allocation2 + $0x30] sm:$0xff]
        %v534 = vld [vmem:[#allocation2 + $0x38] sm:$0xff]
        %v535 = vld [vmem:[#allocation2 + $0x40] sm:$0xff]
        %v536 = vld [vmem:[#allocation2 + $0x48] sm:$0xff]
        %v537 = vld [vmem:[#allocation2 + $0x50] sm:$0xff]
        %v538 = vld [vmem:[#allocation2 + $0x58] sm:$0xff]
        %v539 = vld [vmem:[#allocation2 + $0x60] sm:$0xff]
        %v540 = vld [vmem:[#allocation2 + $0x68] sm:$0xff]
        %v541 = vld [vmem:[#allocation2 + $0x70] sm:$0xff]
        %v542 = vld [vmem:[#allocation2 + $0x78] sm:$0xff]
        %v543 = vld [vmem:[%s1] sm:$0xf]
        %v544 = vld [vmem:[%s1 + $0x4] sm:$0x3]
        %v547 = vunpack.c.l.b16 %v543
        %v548 = vunpack.c.l.b16 %v544
        %v549 = vpack.c.b16 %v548, %v547
        %vm550 = vcmask 97280
        %v551 = vsel %vm550, %v512, 0
        %v553 = vsel %vm550, %v514, 0
        %v555 = vsel %vm550, %v516, 0
        %v557 = vsel %vm550, %v518, 0
        %v559 = vsel %vm550, %v520, 0
        %v561 = vsel %vm550, %v522, 0
        %v563 = vsel %vm550, %v524, 0
        %v565 = vsel %vm550, %v526, 0
        %vm567 = vcmask 1045504
        %v569 = vsel %vm567, %v549, 0
        %571 = vmatpush.bf16.msra.mxu0 0
        %572 = vmatpush.bf16.msra.mxu0 0
        %573 = vmatpush.bf16.msra.mxu0 0
        %574 = vmatpush.bf16.msra.mxu0 0
        %575 = vmatpush.bf16.msra.mxu0 0
        %576 = vmatpush.bf16.msra.mxu0 0
        %577 = vmatpush.bf16.msra.mxu0 0
        %578 = vmatpush.bf16.msra.mxu0 %v569
        %579 = vmatmul.bf16.gmra.mxu0 %v551
        %v580 = vpop.f32.mrf.mxu0
        %v581 = vadd.f32 0.0, %v580
        %v582 = vpop.f32.mrf.mxu0
        %v583 = vadd.f32 0.0, %v582
        %584 = vmatmul.bf16.gmra.mxu0 %v553
        %v585 = vpop.f32.mrf.mxu0
        %v586 = vadd.f32 0.0, %v585
        %v587 = vpop.f32.mrf.mxu0
        %v588 = vadd.f32 0.0, %v587
        %589 = vmatmul.bf16.gmra.mxu0 %v555
        %v590 = vpop.f32.mrf.mxu0
        %v591 = vadd.f32 0.0, %v590
        %v592 = vpop.f32.mrf.mxu0
        %v593 = vadd.f32 0.0, %v592
        %594 = vmatmul.bf16.gmra.mxu0 %v557
        %v595 = vpop.f32.mrf.mxu0
        %v596 = vadd.f32 0.0, %v595
        %v597 = vpop.f32.mrf.mxu0
        %v598 = vadd.f32 0.0, %v597
        %599 = vmatmul.bf16.gmra.mxu0 %v559
        %v600 = vpop.f32.mrf.mxu0
        %v601 = vadd.f32 0.0, %v600
        %v602 = vpop.f32.mrf.mxu0
        %v603 = vadd.f32 0.0, %v602
        %604 = vmatmul.bf16.gmra.mxu0 %v561
        %v605 = vpop.f32.mrf.mxu0
        %v606 = vadd.f32 0.0, %v605
        %v607 = vpop.f32.mrf.mxu0
        %v608 = vadd.f32 0.0, %v607
        %609 = vmatmul.bf16.gmra.mxu0 %v563
        %v610 = vpop.f32.mrf.mxu0
        %v611 = vadd.f32 0.0, %v610
        %v612 = vpop.f32.mrf.mxu0
        %v613 = vadd.f32 0.0, %v612
        %614 = vmatmul.bf16.gmra.mxu0 %v565
        %v615 = vpop.f32.mrf.mxu0
        %v616 = vadd.f32 0.0, %v615
        %v617 = vpop.f32.mrf.mxu0
        %v618 = vadd.f32 0.0, %v617
        %619 = vdwg.mxu0
        %v620 = vadd.f32 %v527, %v581
        %v621 = vadd.f32 %v528, %v583
        %v622 = vadd.f32 %v529, %v586
        %v623 = vadd.f32 %v530, %v588
        %v624 = vadd.f32 %v531, %v591
        %v625 = vadd.f32 %v532, %v593
        %v626 = vadd.f32 %v533, %v596
        %v627 = vadd.f32 %v534, %v598
        %v628 = vadd.f32 %v535, %v601
        %v629 = vadd.f32 %v536, %v603
        %v630 = vadd.f32 %v537, %v606
        %v631 = vadd.f32 %v538, %v608
        %v632 = vadd.f32 %v539, %v611
        %v633 = vadd.f32 %v540, %v613
        %v634 = vadd.f32 %v541, %v616
        %v635 = vadd.f32 %v542, %v618
        %636 = vst [vmem:[#allocation2] sm:$0xff] %v620
        %637 = vst [vmem:[#allocation2 + $0x8] sm:$0xff] %v621
        %638 = vst [vmem:[#allocation2 + $0x10] sm:$0xff] %v622
        %639 = vst [vmem:[#allocation2 + $0x18] sm:$0xff] %v623
        %640 = vst [vmem:[#allocation2 + $0x20] sm:$0xff] %v624
        %641 = vst [vmem:[#allocation2 + $0x28] sm:$0xff] %v625
        %642 = vst [vmem:[#allocation2 + $0x30] sm:$0xff] %v626
        %643 = vst [vmem:[#allocation2 + $0x38] sm:$0xff] %v627
        %644 = vst [vmem:[#allocation2 + $0x40] sm:$0xff] %v628
        %645 = vst [vmem:[#allocation2 + $0x48] sm:$0xff] %v629
        %646 = vst [vmem:[#allocation2 + $0x50] sm:$0xff] %v630
        %647 = vst [vmem:[#allocation2 + $0x58] sm:$0xff] %v631
        %648 = vst [vmem:[#allocation2 + $0x60] sm:$0xff] %v632
        %649 = vst [vmem:[#allocation2 + $0x68] sm:$0xff] %v633
        %650 = vst [vmem:[#allocation2 + $0x70] sm:$0xff] %v634
        %651 = vst [vmem:[#allocation2 + $0x78] sm:$0xff] %v635
        %s652 = scalar_lea.vmem %s196, 12
        %v653 = vld [vmem:[%s652] sm:$0xf]
        %v654 = vld [vmem:[%s652 + $0x4] sm:$0xf]
        %v655 = vld [vmem:[%s652 + $0xc] sm:$0xf]
        %v656 = vld [vmem:[%s652 + $0x10] sm:$0xf]
        %v657 = vld [vmem:[%s652 + $0x18] sm:$0xf]
        %v658 = vld [vmem:[%s652 + $0x1c] sm:$0xf]
        %v659 = vld [vmem:[%s652 + $0x24] sm:$0xf]
        %v660 = vld [vmem:[%s652 + $0x28] sm:$0xf]
        %v661 = vld [vmem:[%s652 + $0x30] sm:$0xf]
        %v662 = vld [vmem:[%s652 + $0x34] sm:$0xf]
        %v663 = vld [vmem:[%s652 + $0x3c] sm:$0xf]
        %v664 = vld [vmem:[%s652 + $0x40] sm:$0xf]
        %v665 = vld [vmem:[%s652 + $0x48] sm:$0xf]
        %v666 = vld [vmem:[%s652 + $0x4c] sm:$0xf]
        %v667 = vld [vmem:[%s652 + $0x54] sm:$0xf]
        %v668 = vld [vmem:[%s652 + $0x58] sm:$0xf]
        %v669 = vld [vmem:[%s652 + $0x8] sm:$0x1]
        %v670 = vld [vmem:[%s652 + $0x14] sm:$0x1]
        %v671 = vld [vmem:[%s652 + $0x20] sm:$0x1]
        %v672 = vld [vmem:[%s652 + $0x2c] sm:$0x1]
        %v673 = vld [vmem:[%s652 + $0x38] sm:$0x1]
        %v674 = vld [vmem:[%s652 + $0x44] sm:$0x1]
        %v675 = vld [vmem:[%s652 + $0x50] sm:$0x1]
        %v676 = vld [vmem:[%s652 + $0x5c] sm:$0x1]
        %v677 = vld [vmem:[%s652] sm:$0xe]
        %v678 = vld [vmem:[%s652 + $0xc] sm:$0xe]
        %v679 = vld [vmem:[%s652 + $0x18] sm:$0xe]
        %v680 = vld [vmem:[%s652 + $0x24] sm:$0xe]
        %v681 = vld [vmem:[%s652 + $0x30] sm:$0xe]
        %v682 = vld [vmem:[%s652 + $0x3c] sm:$0xe]
        %v683 = vld [vmem:[%s652 + $0x48] sm:$0xe]
        %v684 = vld [vmem:[%s652 + $0x54] sm:$0xe]
        %v701 = vunpack.c.l.b16 %v653
        %v702 = vunpack.c.l.b16 %v654
        %v703 = vunpack.c.l.b16 %v655
        %v704 = vunpack.c.l.b16 %v656
        %v705 = vunpack.c.l.b16 %v657
        %v706 = vunpack.c.l.b16 %v658
        %v707 = vunpack.c.l.b16 %v659
        %v708 = vunpack.c.l.b16 %v660
        %v709 = vunpack.c.l.b16 %v661
        %v710 = vunpack.c.l.b16 %v662
        %v711 = vunpack.c.l.b16 %v663
        %v712 = vunpack.c.l.b16 %v664
        %v713 = vunpack.c.l.b16 %v665
        %v714 = vunpack.c.l.b16 %v666
        %v715 = vunpack.c.l.b16 %v667
        %v716 = vunpack.c.l.b16 %v668
        %v717 = vpack.c.b16 %v702, %v701
        %v718 = vpack.c.b16 %v704, %v703
        %v719 = vpack.c.b16 %v706, %v705
        %v720 = vpack.c.b16 %v708, %v707
        %v721 = vpack.c.b16 %v710, %v709
        %v722 = vpack.c.b16 %v712, %v711
        %v723 = vpack.c.b16 %v714, %v713
        %v724 = vpack.c.b16 %v716, %v715
        %v733 = vunpack.c.l.b16 %v669
        %v734 = vunpack.c.l.b16 %v670
        %v735 = vunpack.c.l.b16 %v671
        %v736 = vunpack.c.l.b16 %v672
        %v737 = vunpack.c.l.b16 %v673
        %v738 = vunpack.c.l.b16 %v674
        %v739 = vunpack.c.l.b16 %v675
        %v740 = vunpack.c.l.b16 %v676
        %v741 = vpack.c.b16 %v733, %v733
        %v742 = vpack.c.b16 %v734, %v734
        %v743 = vpack.c.b16 %v735, %v735
        %v744 = vpack.c.b16 %v736, %v736
        %v745 = vpack.c.b16 %v737, %v737
        %v746 = vpack.c.b16 %v738, %v738
        %v747 = vpack.c.b16 %v739, %v739
        %v748 = vpack.c.b16 %v740, %v740
        %v750 = vshrl.u32 %v717, 16
        %v752 = vshll.u32 %v717, 16
        %v754 = vrot.slane %v752, 1
        %v755 = vor.u32 %v750, %v754
        %v757 = vshll.u32 %v741, 16
        %v759 = vrot.slane %v757, 1
        %v760 = vsel %vm315, %v755, %v759
        %v762 = vshrl.u32 %v718, 16
        %v764 = vshll.u32 %v718, 16
        %v766 = vrot.slane %v764, 1
        %v767 = vor.u32 %v762, %v766
        %v769 = vshll.u32 %v742, 16
        %v771 = vrot.slane %v769, 1
        %v772 = vsel %vm315, %v767, %v771
        %v774 = vshrl.u32 %v719, 16
        %v776 = vshll.u32 %v719, 16
        %v778 = vrot.slane %v776, 1
        %v779 = vor.u32 %v774, %v778
        %v781 = vshll.u32 %v743, 16
        %v783 = vrot.slane %v781, 1
        %v784 = vsel %vm315, %v779, %v783
        %v786 = vshrl.u32 %v720, 16
        %v788 = vshll.u32 %v720, 16
        %v790 = vrot.slane %v788, 1
        %v791 = vor.u32 %v786, %v790
        %v793 = vshll.u32 %v744, 16
        %v795 = vrot.slane %v793, 1
        %v796 = vsel %vm315, %v791, %v795
        %v798 = vshrl.u32 %v721, 16
        %v800 = vshll.u32 %v721, 16
        %v802 = vrot.slane %v800, 1
        %v803 = vor.u32 %v798, %v802
        %v805 = vshll.u32 %v745, 16
        %v807 = vrot.slane %v805, 1
        %v808 = vsel %vm315, %v803, %v807
        %v810 = vshrl.u32 %v722, 16
        %v812 = vshll.u32 %v722, 16
        %v814 = vrot.slane %v812, 1
        %v815 = vor.u32 %v810, %v814
        %v817 = vshll.u32 %v746, 16
        %v819 = vrot.slane %v817, 1
        %v820 = vsel %vm315, %v815, %v819
        %v822 = vshrl.u32 %v723, 16
        %v824 = vshll.u32 %v723, 16
        %v826 = vrot.slane %v824, 1
        %v827 = vor.u32 %v822, %v826
        %v829 = vshll.u32 %v747, 16
        %v831 = vrot.slane %v829, 1
        %v832 = vsel %vm315, %v827, %v831
        %v834 = vshrl.u32 %v724, 16
        %v836 = vshll.u32 %v724, 16
        %v838 = vrot.slane %v836, 1
        %v839 = vor.u32 %v834, %v838
        %v841 = vshll.u32 %v748, 16
        %v843 = vrot.slane %v841, 1
        %v844 = vsel %vm315, %v839, %v843
        %845 = vrot.lane.b32.xlu0 %v760, 4
        %v846 = vpop.permute.xlu0 %845
        %847 = vrot.lane.b32.xlu0 %v772, 4
        %v848 = vpop.permute.xlu0 %847
        %849 = vrot.lane.b32.xlu0 %v784, 4
        %v850 = vpop.permute.xlu0 %849
        %851 = vrot.lane.b32.xlu0 %v796, 4
        %v852 = vpop.permute.xlu0 %851
        %853 = vrot.lane.b32.xlu0 %v808, 4
        %v854 = vpop.permute.xlu0 %853
        %855 = vrot.lane.b32.xlu0 %v820, 4
        %v856 = vpop.permute.xlu0 %855
        %857 = vrot.lane.b32.xlu0 %v832, 4
        %v858 = vpop.permute.xlu0 %857
        %859 = vrot.lane.b32.xlu0 %v844, 4
        %v860 = vpop.permute.xlu0 %859
        %v869 = vunpack.c.l.b16 %v677
        %v870 = vunpack.c.l.b16 %v678
        %v871 = vunpack.c.l.b16 %v679
        %v872 = vunpack.c.l.b16 %v680
        %v873 = vunpack.c.l.b16 %v681
        %v874 = vunpack.c.l.b16 %v682
        %v875 = vunpack.c.l.b16 %v683
        %v876 = vunpack.c.l.b16 %v684
        %v877 = vpack.c.b16 %v702, %v869
        %v878 = vpack.c.b16 %v704, %v870
        %v879 = vpack.c.b16 %v706, %v871
        %v880 = vpack.c.b16 %v708, %v872
        %v881 = vpack.c.b16 %v710, %v873
        %v882 = vpack.c.b16 %v712, %v874
        %v883 = vpack.c.b16 %v714, %v875
        %v884 = vpack.c.b16 %v716, %v876
        %v885 = vrot.slane %v877, 1
        %v886 = vrot.slane %v741, 1
        %v887 = vsel %vm452, %v885, %v886
        %v888 = vrot.slane %v878, 1
        %v889 = vrot.slane %v742, 1
        %v890 = vsel %vm452, %v888, %v889
        %v891 = vrot.slane %v879, 1
        %v892 = vrot.slane %v743, 1
        %v893 = vsel %vm452, %v891, %v892
        %v894 = vrot.slane %v880, 1
        %v895 = vrot.slane %v744, 1
        %v896 = vsel %vm452, %v894, %v895
        %v897 = vrot.slane %v881, 1
        %v898 = vrot.slane %v745, 1
        %v899 = vsel %vm452, %v897, %v898
        %v900 = vrot.slane %v882, 1
        %v901 = vrot.slane %v746, 1
        %v902 = vsel %vm452, %v900, %v901
        %v903 = vrot.slane %v883, 1
        %v904 = vrot.slane %v747, 1
        %v905 = vsel %vm452, %v903, %v904
        %v906 = vrot.slane %v884, 1
        %v907 = vrot.slane %v748, 1
        %v908 = vsel %vm452, %v906, %v907
        %909 = vrot.lane.b32.xlu0 %v887, 8
        %v910 = vpop.permute.xlu0 %909
        %911 = vrot.lane.b32.xlu0 %v890, 8
        %v912 = vpop.permute.xlu0 %911
        %913 = vrot.lane.b32.xlu0 %v893, 8
        %v914 = vpop.permute.xlu0 %913
        %915 = vrot.lane.b32.xlu0 %v896, 8
        %v916 = vpop.permute.xlu0 %915
        %917 = vrot.lane.b32.xlu0 %v899, 8
        %v918 = vpop.permute.xlu0 %917
        %919 = vrot.lane.b32.xlu0 %v902, 8
        %v920 = vpop.permute.xlu0 %919
        %921 = vrot.lane.b32.xlu0 %v905, 8
        %v922 = vpop.permute.xlu0 %921
        %923 = vrot.lane.b32.xlu0 %v908, 8
        %v924 = vpop.permute.xlu0 %923
        %v926 = vsel %vm493, %v717, %v846
        %v928 = vsel %vm493, %v718, %v848
        %v930 = vsel %vm493, %v719, %v850
        %v932 = vsel %vm493, %v720, %v852
        %v934 = vsel %vm493, %v721, %v854
        %v936 = vsel %vm493, %v722, %v856
        %v938 = vsel %vm493, %v723, %v858
        %v940 = vsel %vm493, %v724, %v860
        %v942 = vsel %vm510, %v926, %v910
        %v944 = vsel %vm510, %v928, %v912
        %v946 = vsel %vm510, %v930, %v914
        %v948 = vsel %vm510, %v932, %v916
        %v950 = vsel %vm510, %v934, %v918
        %v952 = vsel %vm510, %v936, %v920
        %v954 = vsel %vm510, %v938, %v922
        %v956 = vsel %vm510, %v940, %v924
        %v957 = vld [vmem:[#allocation2] sm:$0xff]
        %v958 = vld [vmem:[#allocation2 + $0x8] sm:$0xff]
        %v959 = vld [vmem:[#allocation2 + $0x10] sm:$0xff]
        %v960 = vld [vmem:[#allocation2 + $0x18] sm:$0xff]
        %v961 = vld [vmem:[#allocation2 + $0x20] sm:$0xff]
        %v962 = vld [vmem:[#allocation2 + $0x28] sm:$0xff]
        %v963 = vld [vmem:[#allocation2 + $0x30] sm:$0xff]
        %v964 = vld [vmem:[#allocation2 + $0x38] sm:$0xff]
        %v965 = vld [vmem:[#allocation2 + $0x40] sm:$0xff]
        %v966 = vld [vmem:[#allocation2 + $0x48] sm:$0xff]
        %v967 = vld [vmem:[#allocation2 + $0x50] sm:$0xff]
        %v968 = vld [vmem:[#allocation2 + $0x58] sm:$0xff]
        %v969 = vld [vmem:[#allocation2 + $0x60] sm:$0xff]
        %v970 = vld [vmem:[#allocation2 + $0x68] sm:$0xff]
        %v971 = vld [vmem:[#allocation2 + $0x70] sm:$0xff]
        %v972 = vld [vmem:[#allocation2 + $0x78] sm:$0xff]
        %s973 = scalar_lea.vmem %s1, 8
        %v974 = vld [vmem:[%s973] sm:$0xf]
        %v975 = vld [vmem:[%s973 + $0x4] sm:$0x3]
        %v978 = vunpack.c.l.b16 %v974
        %v979 = vunpack.c.l.b16 %v975
        %v980 = vpack.c.b16 %v979, %v978
        %v981 = vsel %vm550, %v942, 0
        %v983 = vsel %vm550, %v944, 0
        %v985 = vsel %vm550, %v946, 0
        %v987 = vsel %vm550, %v948, 0
        %v989 = vsel %vm550, %v950, 0
        %v991 = vsel %vm550, %v952, 0
        %v993 = vsel %vm550, %v954, 0
        %v995 = vsel %vm550, %v956, 0
        %v998 = vsel %vm567, %v980, 0
        %1000 = vmatpush.bf16.msra.mxu0 0
        %1001 = vmatpush.bf16.msra.mxu0 0
        %1002 = vmatpush.bf16.msra.mxu0 0
        %1003 = vmatpush.bf16.msra.mxu0 0
        %1004 = vmatpush.bf16.msra.mxu0 0
        %1005 = vmatpush.bf16.msra.mxu0 0
        %1006 = vmatpush.bf16.msra.mxu0 0
        %1007 = vmatpush.bf16.msra.mxu0 %v998
        %1008 = vmatmul.bf16.gmra.mxu0 %v981
        %v1009 = vpop.f32.mrf.mxu0
        %v1010 = vadd.f32 0.0, %v1009
        %v1011 = vpop.f32.mrf.mxu0
        %v1012 = vadd.f32 0.0, %v1011
        %1013 = vmatmul.bf16.gmra.mxu0 %v983
        %v1014 = vpop.f32.mrf.mxu0
        %v1015 = vadd.f32 0.0, %v1014
        %v1016 = vpop.f32.mrf.mxu0
        %v1017 = vadd.f32 0.0, %v1016
        %1018 = vmatmul.bf16.gmra.mxu0 %v985
        %v1019 = vpop.f32.mrf.mxu0
        %v1020 = vadd.f32 0.0, %v1019
        %v1021 = vpop.f32.mrf.mxu0
        %v1022 = vadd.f32 0.0, %v1021
        %1023 = vmatmul.bf16.gmra.mxu0 %v987
        %v1024 = vpop.f32.mrf.mxu0
        %v1025 = vadd.f32 0.0, %v1024
        %v1026 = vpop.f32.mrf.mxu0
        %v1027 = vadd.f32 0.0, %v1026
        %1028 = vmatmul.bf16.gmra.mxu0 %v989
        %v1029 = vpop.f32.mrf.mxu0
        %v1030 = vadd.f32 0.0, %v1029
        %v1031 = vpop.f32.mrf.mxu0
        %v1032 = vadd.f32 0.0, %v1031
        %1033 = vmatmul.bf16.gmra.mxu0 %v991
        %v1034 = vpop.f32.mrf.mxu0
        %v1035 = vadd.f32 0.0, %v1034
        %v1036 = vpop.f32.mrf.mxu0
        %v1037 = vadd.f32 0.0, %v1036
        %1038 = vmatmul.bf16.gmra.mxu0 %v993
        %v1039 = vpop.f32.mrf.mxu0
        %v1040 = vadd.f32 0.0, %v1039
        %v1041 = vpop.f32.mrf.mxu0
        %v1042 = vadd.f32 0.0, %v1041
        %1043 = vmatmul.bf16.gmra.mxu0 %v995
        %v1044 = vpop.f32.mrf.mxu0
        %v1045 = vadd.f32 0.0, %v1044
        %v1046 = vpop.f32.mrf.mxu0
        %v1047 = vadd.f32 0.0, %v1046
        %1048 = vdwg.mxu0
        %v1049 = vadd.f32 %v957, %v1010
        %v1050 = vadd.f32 %v958, %v1012
        %v1051 = vadd.f32 %v959, %v1015
        %v1052 = vadd.f32 %v960, %v1017
        %v1053 = vadd.f32 %v961, %v1020
        %v1054 = vadd.f32 %v962, %v1022
        %v1055 = vadd.f32 %v963, %v1025
        %v1056 = vadd.f32 %v964, %v1027
        %v1057 = vadd.f32 %v965, %v1030
        %v1058 = vadd.f32 %v966, %v1032
        %v1059 = vadd.f32 %v967, %v1035
        %v1060 = vadd.f32 %v968, %v1037
        %v1061 = vadd.f32 %v969, %v1040
        %v1062 = vadd.f32 %v970, %v1042
        %v1063 = vadd.f32 %v971, %v1045
        %v1064 = vadd.f32 %v972, %v1047
        %1065 = vst [vmem:[#allocation2] sm:$0xff] %v1049
        %1066 = vst [vmem:[#allocation2 + $0x8] sm:$0xff] %v1050
        %1067 = vst [vmem:[#allocation2 + $0x10] sm:$0xff] %v1051
        %1068 = vst [vmem:[#allocation2 + $0x18] sm:$0xff] %v1052
        %1069 = vst [vmem:[#allocation2 + $0x20] sm:$0xff] %v1053
        %1070 = vst [vmem:[#allocation2 + $0x28] sm:$0xff] %v1054
        %1071 = vst [vmem:[#allocation2 + $0x30] sm:$0xff] %v1055
        %1072 = vst [vmem:[#allocation2 + $0x38] sm:$0xff] %v1056
        %1073 = vst [vmem:[#allocation2 + $0x40] sm:$0xff] %v1057
        %1074 = vst [vmem:[#allocation2 + $0x48] sm:$0xff] %v1058
        %1075 = vst [vmem:[#allocation2 + $0x50] sm:$0xff] %v1059
        %1076 = vst [vmem:[#allocation2 + $0x58] sm:$0xff] %v1060
        %1077 = vst [vmem:[#allocation2 + $0x60] sm:$0xff] %v1061
        %1078 = vst [vmem:[#allocation2 + $0x68] sm:$0xff] %v1062
        %1079 = vst [vmem:[#allocation2 + $0x70] sm:$0xff] %v1063
        %1080 = vst [vmem:[#allocation2 + $0x78] sm:$0xff] %v1064
        %s1081 = scalar_lea.vmem %s196, 24
        %v1082 = vld [vmem:[%s1081] sm:$0xf]
        %v1083 = vld [vmem:[%s1081 + $0x4] sm:$0xf]
        %v1084 = vld [vmem:[%s1081 + $0xc] sm:$0xf]
        %v1085 = vld [vmem:[%s1081 + $0x10] sm:$0xf]
        %v1086 = vld [vmem:[%s1081 + $0x18] sm:$0xf]
        %v1087 = vld [vmem:[%s1081 + $0x1c] sm:$0xf]
        %v1088 = vld [vmem:[%s1081 + $0x24] sm:$0xf]
        %v1089 = vld [vmem:[%s1081 + $0x28] sm:$0xf]
        %v1090 = vld [vmem:[%s1081 + $0x30] sm:$0xf]
        %v1091 = vld [vmem:[%s1081 + $0x34] sm:$0xf]
        %v1092 = vld [vmem:[%s1081 + $0x3c] sm:$0xf]
        %v1093 = vld [vmem:[%s1081 + $0x40] sm:$0xf]
        %v1094 = vld [vmem:[%s1081 + $0x48] sm:$0xf]
        %v1095 = vld [vmem:[%s1081 + $0x4c] sm:$0xf]
        %v1096 = vld [vmem:[%s1081 + $0x54] sm:$0xf]
        %v1097 = vld [vmem:[%s1081 + $0x58] sm:$0xf]
        %v1098 = vld [vmem:[%s1081 + $0x8] sm:$0x1]
        %v1099 = vld [vmem:[%s1081 + $0x14] sm:$0x1]
        %v1100 = vld [vmem:[%s1081 + $0x20] sm:$0x1]
        %v1101 = vld [vmem:[%s1081 + $0x2c] sm:$0x1]
        %v1102 = vld [vmem:[%s1081 + $0x38] sm:$0x1]
        %v1103 = vld [vmem:[%s1081 + $0x44] sm:$0x1]
        %v1104 = vld [vmem:[%s1081 + $0x50] sm:$0x1]
        %v1105 = vld [vmem:[%s1081 + $0x5c] sm:$0x1]
        %v1106 = vld [vmem:[%s1081] sm:$0xe]
        %v1107 = vld [vmem:[%s1081 + $0xc] sm:$0xe]
        %v1108 = vld [vmem:[%s1081 + $0x18] sm:$0xe]
        %v1109 = vld [vmem:[%s1081 + $0x24] sm:$0xe]
        %v1110 = vld [vmem:[%s1081 + $0x30] sm:$0xe]
        %v1111 = vld [vmem:[%s1081 + $0x3c] sm:$0xe]
        %v1112 = vld [vmem:[%s1081 + $0x48] sm:$0xe]
        %v1113 = vld [vmem:[%s1081 + $0x54] sm:$0xe]
        %v1130 = vunpack.c.l.b16 %v1082
        %v1131 = vunpack.c.l.b16 %v1083
        %v1132 = vunpack.c.l.b16 %v1084
        %v1133 = vunpack.c.l.b16 %v1085
        %v1134 = vunpack.c.l.b16 %v1086
        %v1135 = vunpack.c.l.b16 %v1087
        %v1136 = vunpack.c.l.b16 %v1088
        %v1137 = vunpack.c.l.b16 %v1089
        %v1138 = vunpack.c.l.b16 %v1090
        %v1139 = vunpack.c.l.b16 %v1091
        %v1140 = vunpack.c.l.b16 %v1092
        %v1141 = vunpack.c.l.b16 %v1093
        %v1142 = vunpack.c.l.b16 %v1094
        %v1143 = vunpack.c.l.b16 %v1095
        %v1144 = vunpack.c.l.b16 %v1096
        %v1145 = vunpack.c.l.b16 %v1097
        %v1146 = vpack.c.b16 %v1131, %v1130
        %v1147 = vpack.c.b16 %v1133, %v1132
        %v1148 = vpack.c.b16 %v1135, %v1134
        %v1149 = vpack.c.b16 %v1137, %v1136
        %v1150 = vpack.c.b16 %v1139, %v1138
        %v1151 = vpack.c.b16 %v1141, %v1140
        %v1152 = vpack.c.b16 %v1143, %v1142
        %v1153 = vpack.c.b16 %v1145, %v1144
        %v1162 = vunpack.c.l.b16 %v1098
        %v1163 = vunpack.c.l.b16 %v1099
        %v1164 = vunpack.c.l.b16 %v1100
        %v1165 = vunpack.c.l.b16 %v1101
        %v1166 = vunpack.c.l.b16 %v1102
        %v1167 = vunpack.c.l.b16 %v1103
        %v1168 = vunpack.c.l.b16 %v1104
        %v1169 = vunpack.c.l.b16 %v1105
        %v1170 = vpack.c.b16 %v1162, %v1162
        %v1171 = vpack.c.b16 %v1163, %v1163
        %v1172 = vpack.c.b16 %v1164, %v1164
        %v1173 = vpack.c.b16 %v1165, %v1165
        %v1174 = vpack.c.b16 %v1166, %v1166
        %v1175 = vpack.c.b16 %v1167, %v1167
        %v1176 = vpack.c.b16 %v1168, %v1168
        %v1177 = vpack.c.b16 %v1169, %v1169
        %v1179 = vshrl.u32 %v1146, 16
        %v1181 = vshll.u32 %v1146, 16
        %v1183 = vrot.slane %v1181, 1
        %v1184 = vor.u32 %v1179, %v1183
        %v1186 = vshll.u32 %v1170, 16
        %v1188 = vrot.slane %v1186, 1
        %v1189 = vsel %vm315, %v1184, %v1188
        %v1191 = vshrl.u32 %v1147, 16
        %v1193 = vshll.u32 %v1147, 16
        %v1195 = vrot.slane %v1193, 1
        %v1196 = vor.u32 %v1191, %v1195
        %v1198 = vshll.u32 %v1171, 16
        %v1200 = vrot.slane %v1198, 1
        %v1201 = vsel %vm315, %v1196, %v1200
        %v1203 = vshrl.u32 %v1148, 16
        %v1205 = vshll.u32 %v1148, 16
        %v1207 = vrot.slane %v1205, 1
        %v1208 = vor.u32 %v1203, %v1207
        %v1210 = vshll.u32 %v1172, 16
        %v1212 = vrot.slane %v1210, 1
        %v1213 = vsel %vm315, %v1208, %v1212
        %v1215 = vshrl.u32 %v1149, 16
        %v1217 = vshll.u32 %v1149, 16
        %v1219 = vrot.slane %v1217, 1
        %v1220 = vor.u32 %v1215, %v1219
        %v1222 = vshll.u32 %v1173, 16
        %v1224 = vrot.slane %v1222, 1
        %v1225 = vsel %vm315, %v1220, %v1224
        %v1227 = vshrl.u32 %v1150, 16
        %v1229 = vshll.u32 %v1150, 16
        %v1231 = vrot.slane %v1229, 1
        %v1232 = vor.u32 %v1227, %v1231
        %v1234 = vshll.u32 %v1174, 16
        %v1236 = vrot.slane %v1234, 1
        %v1237 = vsel %vm315, %v1232, %v1236
        %v1239 = vshrl.u32 %v1151, 16
        %v1241 = vshll.u32 %v1151, 16
        %v1243 = vrot.slane %v1241, 1
        %v1244 = vor.u32 %v1239, %v1243
        %v1246 = vshll.u32 %v1175, 16
        %v1248 = vrot.slane %v1246, 1
        %v1249 = vsel %vm315, %v1244, %v1248
        %v1251 = vshrl.u32 %v1152, 16
        %v1253 = vshll.u32 %v1152, 16
        %v1255 = vrot.slane %v1253, 1
        %v1256 = vor.u32 %v1251, %v1255
        %v1258 = vshll.u32 %v1176, 16
        %v1260 = vrot.slane %v1258, 1
        %v1261 = vsel %vm315, %v1256, %v1260
        %v1263 = vshrl.u32 %v1153, 16
        %v1265 = vshll.u32 %v1153, 16
        %v1267 = vrot.slane %v1265, 1
        %v1268 = vor.u32 %v1263, %v1267
        %v1270 = vshll.u32 %v1177, 16
        %v1272 = vrot.slane %v1270, 1
        %v1273 = vsel %vm315, %v1268, %v1272
        %1274 = vrot.lane.b32.xlu0 %v1189, 4
        %v1275 = vpop.permute.xlu0 %1274
        %1276 = vrot.lane.b32.xlu0 %v1201, 4
        %v1277 = vpop.permute.xlu0 %1276
        %1278 = vrot.lane.b32.xlu0 %v1213, 4
        %v1279 = vpop.permute.xlu0 %1278
        %1280 = vrot.lane.b32.xlu0 %v1225, 4
        %v1281 = vpop.permute.xlu0 %1280
        %1282 = vrot.lane.b32.xlu0 %v1237, 4
        %v1283 = vpop.permute.xlu0 %1282
        %1284 = vrot.lane.b32.xlu0 %v1249, 4
        %v1285 = vpop.permute.xlu0 %1284
        %1286 = vrot.lane.b32.xlu0 %v1261, 4
        %v1287 = vpop.permute.xlu0 %1286
        %1288 = vrot.lane.b32.xlu0 %v1273, 4
        %v1289 = vpop.permute.xlu0 %1288
        %v1298 = vunpack.c.l.b16 %v1106
        %v1299 = vunpack.c.l.b16 %v1107
        %v1300 = vunpack.c.l.b16 %v1108
        %v1301 = vunpack.c.l.b16 %v1109
        %v1302 = vunpack.c.l.b16 %v1110
        %v1303 = vunpack.c.l.b16 %v1111
        %v1304 = vunpack.c.l.b16 %v1112
        %v1305 = vunpack.c.l.b16 %v1113
        %v1306 = vpack.c.b16 %v1131, %v1298
        %v1307 = vpack.c.b16 %v1133, %v1299
        %v1308 = vpack.c.b16 %v1135, %v1300
        %v1309 = vpack.c.b16 %v1137, %v1301
        %v1310 = vpack.c.b16 %v1139, %v1302
        %v1311 = vpack.c.b16 %v1141, %v1303
        %v1312 = vpack.c.b16 %v1143, %v1304
        %v1313 = vpack.c.b16 %v1145, %v1305
        %v1314 = vrot.slane %v1306, 1
        %v1315 = vrot.slane %v1170, 1
        %v1316 = vsel %vm452, %v1314, %v1315
        %v1317 = vrot.slane %v1307, 1
        %v1318 = vrot.slane %v1171, 1
        %v1319 = vsel %vm452, %v1317, %v1318
        %v1320 = vrot.slane %v1308, 1
        %v1321 = vrot.slane %v1172, 1
        %v1322 = vsel %vm452, %v1320, %v1321
        %v1323 = vrot.slane %v1309, 1
        %v1324 = vrot.slane %v1173, 1
        %v1325 = vsel %vm452, %v1323, %v1324
        %v1326 = vrot.slane %v1310, 1
        %v1327 = vrot.slane %v1174, 1
        %v1328 = vsel %vm452, %v1326, %v1327
        %v1329 = vrot.slane %v1311, 1
        %v1330 = vrot.slane %v1175, 1
        %v1331 = vsel %vm452, %v1329, %v1330
        %v1332 = vrot.slane %v1312, 1
        %v1333 = vrot.slane %v1176, 1
        %v1334 = vsel %vm452, %v1332, %v1333
        %v1335 = vrot.slane %v1313, 1
        %v1336 = vrot.slane %v1177, 1
        %v1337 = vsel %vm452, %v1335, %v1336
        %1338 = vrot.lane.b32.xlu0 %v1316, 8
        %v1339 = vpop.permute.xlu0 %1338
        %1340 = vrot.lane.b32.xlu0 %v1319, 8
        %v1341 = vpop.permute.xlu0 %1340
        %1342 = vrot.lane.b32.xlu0 %v1322, 8
        %v1343 = vpop.permute.xlu0 %1342
        %1344 = vrot.lane.b32.xlu0 %v1325, 8
        %v1345 = vpop.permute.xlu0 %1344
        %1346 = vrot.lane.b32.xlu0 %v1328, 8
        %v1347 = vpop.permute.xlu0 %1346
        %1348 = vrot.lane.b32.xlu0 %v1331, 8
        %v1349 = vpop.permute.xlu0 %1348
        %1350 = vrot.lane.b32.xlu0 %v1334, 8
        %v1351 = vpop.permute.xlu0 %1350
        %1352 = vrot.lane.b32.xlu0 %v1337, 8
        %v1353 = vpop.permute.xlu0 %1352
        %v1355 = vsel %vm493, %v1146, %v1275
        %v1357 = vsel %vm493, %v1147, %v1277
        %v1359 = vsel %vm493, %v1148, %v1279
        %v1361 = vsel %vm493, %v1149, %v1281
        %v1363 = vsel %vm493, %v1150, %v1283
        %v1365 = vsel %vm493, %v1151, %v1285
        %v1367 = vsel %vm493, %v1152, %v1287
        %v1369 = vsel %vm493, %v1153, %v1289
        %v1371 = vsel %vm510, %v1355, %v1339
        %v1373 = vsel %vm510, %v1357, %v1341
        %v1375 = vsel %vm510, %v1359, %v1343
        %v1377 = vsel %vm510, %v1361, %v1345
        %v1379 = vsel %vm510, %v1363, %v1347
        %v1381 = vsel %vm510, %v1365, %v1349
        %v1383 = vsel %vm510, %v1367, %v1351
        %v1385 = vsel %vm510, %v1369, %v1353
        %v1386 = vld [vmem:[#allocation2] sm:$0xff]
        %v1387 = vld [vmem:[#allocation2 + $0x8] sm:$0xff]
        %v1388 = vld [vmem:[#allocation2 + $0x10] sm:$0xff]
        %v1389 = vld [vmem:[#allocation2 + $0x18] sm:$0xff]
        %v1390 = vld [vmem:[#allocation2 + $0x20] sm:$0xff]
        %v1391 = vld [vmem:[#allocation2 + $0x28] sm:$0xff]
        %v1392 = vld [vmem:[#allocation2 + $0x30] sm:$0xff]
        %v1393 = vld [vmem:[#allocation2 + $0x38] sm:$0xff]
        %v1394 = vld [vmem:[#allocation2 + $0x40] sm:$0xff]
        %v1395 = vld [vmem:[#allocation2 + $0x48] sm:$0xff]
        %v1396 = vld [vmem:[#allocation2 + $0x50] sm:$0xff]
        %v1397 = vld [vmem:[#allocation2 + $0x58] sm:$0xff]
        %v1398 = vld [vmem:[#allocation2 + $0x60] sm:$0xff]
        %v1399 = vld [vmem:[#allocation2 + $0x68] sm:$0xff]
        %v1400 = vld [vmem:[#allocation2 + $0x70] sm:$0xff]
        %v1401 = vld [vmem:[#allocation2 + $0x78] sm:$0xff]
        %s1402 = scalar_lea.vmem %s1, 16
        %v1403 = vld [vmem:[%s1402] sm:$0xf]
        %v1404 = vld [vmem:[%s1402 + $0x4] sm:$0x3]
        %v1407 = vunpack.c.l.b16 %v1403
        %v1408 = vunpack.c.l.b16 %v1404
        %v1409 = vpack.c.b16 %v1408, %v1407
        %v1410 = vsel %vm550, %v1371, 0
        %v1412 = vsel %vm550, %v1373, 0
        %v1414 = vsel %vm550, %v1375, 0
        %v1416 = vsel %vm550, %v1377, 0
        %v1418 = vsel %vm550, %v1379, 0
        %v1420 = vsel %vm550, %v1381, 0
        %v1422 = vsel %vm550, %v1383, 0
        %v1424 = vsel %vm550, %v1385, 0
        %v1427 = vsel %vm567, %v1409, 0
        %1429 = vmatpush.bf16.msra.mxu0 0
        %1430 = vmatpush.bf16.msra.mxu0 0
        %1431 = vmatpush.bf16.msra.mxu0 0
        %1432 = vmatpush.bf16.msra.mxu0 0
        %1433 = vmatpush.bf16.msra.mxu0 0
        %1434 = vmatpush.bf16.msra.mxu0 0
        %1435 = vmatpush.bf16.msra.mxu0 0
        %1436 = vmatpush.bf16.msra.mxu0 %v1427
        %1437 = vmatmul.bf16.gmra.mxu0 %v1410
        %v1438 = vpop.f32.mrf.mxu0
        %v1439 = vadd.f32 0.0, %v1438
        %v1440 = vpop.f32.mrf.mxu0
        %v1441 = vadd.f32 0.0, %v1440
        %1442 = vmatmul.bf16.gmra.mxu0 %v1412
        %v1443 = vpop.f32.mrf.mxu0
        %v1444 = vadd.f32 0.0, %v1443
        %v1445 = vpop.f32.mrf.mxu0
        %v1446 = vadd.f32 0.0, %v1445
        %1447 = vmatmul.bf16.gmra.mxu0 %v1414
        %v1448 = vpop.f32.mrf.mxu0
        %v1449 = vadd.f32 0.0, %v1448
        %v1450 = vpop.f32.mrf.mxu0
        %v1451 = vadd.f32 0.0, %v1450
        %1452 = vmatmul.bf16.gmra.mxu0 %v1416
        %v1453 = vpop.f32.mrf.mxu0
        %v1454 = vadd.f32 0.0, %v1453
        %v1455 = vpop.f32.mrf.mxu0
        %v1456 = vadd.f32 0.0, %v1455
        %1457 = vmatmul.bf16.gmra.mxu0 %v1418
        %v1458 = vpop.f32.mrf.mxu0
        %v1459 = vadd.f32 0.0, %v1458
        %v1460 = vpop.f32.mrf.mxu0
        %v1461 = vadd.f32 0.0, %v1460
        %1462 = vmatmul.bf16.gmra.mxu0 %v1420
        %v1463 = vpop.f32.mrf.mxu0
        %v1464 = vadd.f32 0.0, %v1463
        %v1465 = vpop.f32.mrf.mxu0
        %v1466 = vadd.f32 0.0, %v1465
        %1467 = vmatmul.bf16.gmra.mxu0 %v1422
        %v1468 = vpop.f32.mrf.mxu0
        %v1469 = vadd.f32 0.0, %v1468
        %v1470 = vpop.f32.mrf.mxu0
        %v1471 = vadd.f32 0.0, %v1470
        %1472 = vmatmul.bf16.gmra.mxu0 %v1424
        %v1473 = vpop.f32.mrf.mxu0
        %v1474 = vadd.f32 0.0, %v1473
        %v1475 = vpop.f32.mrf.mxu0
        %v1476 = vadd.f32 0.0, %v1475
        %1477 = vdwg.mxu0
        %v1478 = vadd.f32 %v1386, %v1439
        %v1479 = vadd.f32 %v1387, %v1441
        %v1480 = vadd.f32 %v1388, %v1444
        %v1481 = vadd.f32 %v1389, %v1446
        %v1482 = vadd.f32 %v1390, %v1449
        %v1483 = vadd.f32 %v1391, %v1451
        %v1484 = vadd.f32 %v1392, %v1454
        %v1485 = vadd.f32 %v1393, %v1456
        %v1486 = vadd.f32 %v1394, %v1459
        %v1487 = vadd.f32 %v1395, %v1461
        %v1488 = vadd.f32 %v1396, %v1464
        %v1489 = vadd.f32 %v1397, %v1466
        %v1490 = vadd.f32 %v1398, %v1469
        %v1491 = vadd.f32 %v1399, %v1471
        %v1492 = vadd.f32 %v1400, %v1474
        %v1493 = vadd.f32 %v1401, %v1476
        %1494 = vst [vmem:[#allocation2] sm:$0xff] %v1478
        %1495 = vst [vmem:[#allocation2 + $0x8] sm:$0xff] %v1479
        %1496 = vst [vmem:[#allocation2 + $0x10] sm:$0xff] %v1480
        %1497 = vst [vmem:[#allocation2 + $0x18] sm:$0xff] %v1481
        %1498 = vst [vmem:[#allocation2 + $0x20] sm:$0xff] %v1482
        %1499 = vst [vmem:[#allocation2 + $0x28] sm:$0xff] %v1483
        %1500 = vst [vmem:[#allocation2 + $0x30] sm:$0xff] %v1484
        %1501 = vst [vmem:[#allocation2 + $0x38] sm:$0xff] %v1485
        %1502 = vst [vmem:[#allocation2 + $0x40] sm:$0xff] %v1486
        %1503 = vst [vmem:[#allocation2 + $0x48] sm:$0xff] %v1487
        %1504 = vst [vmem:[#allocation2 + $0x50] sm:$0xff] %v1488
        %1505 = vst [vmem:[#allocation2 + $0x58] sm:$0xff] %v1489
        %1506 = vst [vmem:[#allocation2 + $0x60] sm:$0xff] %v1490
        %1507 = vst [vmem:[#allocation2 + $0x68] sm:$0xff] %v1491
        %1508 = vst [vmem:[#allocation2 + $0x70] sm:$0xff] %v1492
        %1509 = vst [vmem:[#allocation2 + $0x78] sm:$0xff] %v1493
        %v1510 = vld [vmem:[#allocation2] sm:$0xff]
        %v1511 = vld [vmem:[#allocation2 + $0x8] sm:$0xff]
        %v1512 = vld [vmem:[#allocation2 + $0x10] sm:$0xff]
        %v1513 = vld [vmem:[#allocation2 + $0x18] sm:$0xff]
        %v1514 = vld [vmem:[#allocation2 + $0x20] sm:$0xff]
        %v1515 = vld [vmem:[#allocation2 + $0x28] sm:$0xff]
        %v1516 = vld [vmem:[#allocation2 + $0x30] sm:$0xff]
        %v1517 = vld [vmem:[#allocation2 + $0x38] sm:$0xff]
        %v1518 = vld [vmem:[#allocation2 + $0x40] sm:$0xff]
        %v1519 = vld [vmem:[#allocation2 + $0x48] sm:$0xff]
        %v1520 = vld [vmem:[#allocation2 + $0x50] sm:$0xff]
        %v1521 = vld [vmem:[#allocation2 + $0x58] sm:$0xff]
        %v1522 = vld [vmem:[#allocation2 + $0x60] sm:$0xff]
        %v1523 = vld [vmem:[#allocation2 + $0x68] sm:$0xff]
        %v1524 = vld [vmem:[#allocation2 + $0x70] sm:$0xff]
        %v1525 = vld [vmem:[#allocation2 + $0x78] sm:$0xff]
        %v1526 = vmax.f32 %v1510, 0.0
        %v1527 = vmax.f32 %v1511, 0.0
        %v1528 = vmax.f32 %v1512, 0.0
        %v1529 = vmax.f32 %v1513, 0.0
        %v1530 = vmax.f32 %v1514, 0.0
        %v1531 = vmax.f32 %v1515, 0.0
        %v1532 = vmax.f32 %v1516, 0.0
        %v1533 = vmax.f32 %v1517, 0.0
        %v1534 = vmax.f32 %v1518, 0.0
        %v1535 = vmax.f32 %v1519, 0.0
        %v1536 = vmax.f32 %v1520, 0.0
        %v1537 = vmax.f32 %v1521, 0.0
        %v1538 = vmax.f32 %v1522, 0.0
        %v1539 = vmax.f32 %v1523, 0.0
        %v1540 = vmax.f32 %v1524, 0.0
        %v1541 = vmax.f32 %v1525, 0.0
        %1542 = vst [vmem:[%s187] sm:$0xff] %v1526
        %1543 = vst [vmem:[%s187 + $0x8] sm:$0xff] %v1527
        %1544 = vst [vmem:[%s187 + $0x10] sm:$0xff] %v1528
        %1545 = vst [vmem:[%s187 + $0x18] sm:$0xff] %v1529
        %1546 = vst [vmem:[%s187 + $0x20] sm:$0xff] %v1530
        %1547 = vst [vmem:[%s187 + $0x28] sm:$0xff] %v1531
        %1548 = vst [vmem:[%s187 + $0x30] sm:$0xff] %v1532
        %1549 = vst [vmem:[%s187 + $0x38] sm:$0xff] %v1533
        %1550 = vst [vmem:[%s187 + $0x40] sm:$0xff] %v1534
        %1551 = vst [vmem:[%s187 + $0x48] sm:$0xff] %v1535
        %1552 = vst [vmem:[%s187 + $0x50] sm:$0xff] %v1536
        %1553 = vst [vmem:[%s187 + $0x58] sm:$0xff] %v1537
        %1554 = vst [vmem:[%s187 + $0x60] sm:$0xff] %v1538
        %1555 = vst [vmem:[%s187 + $0x68] sm:$0xff] %v1539
        %1556 = vst [vmem:[%s187 + $0x70] sm:$0xff] %v1540
        %1557 = vst [vmem:[%s187 + $0x78] sm:$0xff] %v1541
        %s1558 = sand.u32 %s109, 1
        %s1559 = scalar_lea.sflag [#allocation4], %s1558
        %s1560 = sand.u32 %s109, 1
        %s1561 = smul.addr %s1560, 128
        %s1562 = scalar_lea.vmem [#allocation3], %s1561
        // Predicated region
        $region33: #{tpu_custom_call.1} parent=31 // pred_check
          %p1563 = pneg %p119
        $region34: #{tpu_custom_call.1} parent=31 // pred_check_branch
          %1565 = sbr.rel (%p1563) target = $region36
        $region35: #{tpu_custom_call.1} parent=31 // pred_region
          %s1566 = smul.u32 16, %s22
          %1568 = vsyncadd %s1559, 0
          %s1569 = smul.addr %s21, 32
          %s1570 = sadd.s32 %s1566, %s1569
          %s1571 = smul.addr %s1570, 8
          %s1572 = scalar_lea.hbm %s3, %s1571
          %s1573 = sshll.u32 %s1562, 4
          %s1574 = int_to_ptr.vmem [resolvable:$true] %s1573
          %s1575 = sshll.u32 %s1572, 4
          %s1576 = int_to_ptr.hbm [resolvable:$true] %s1575
          %1581 = dma.vmem_to_hbm [thread:$0]  %s1574, 2048, %s1576, %s1559, 128, 128, 8
        $region36: #{tpu_custom_call.1} parent=31 // pred_fallthru
          _
      $region32: #{tpu_custom_call.1} parent=5 // pred_fallthru
        _
      %p1582 = scmp.le.s32.totalorder 2, %s12
      // Predicated region
      $region37: #{tpu_custom_call.1} parent=5 // pred_check
        %p1583 = pneg %p1582
      $region38: #{tpu_custom_call.1} parent=5 // pred_check_branch
        %1585 = sbr.rel (%p1583) target = $region40
      $region39: #{tpu_custom_call.1} parent=5 // pred_region
        %s1586 = ssub.s32 %s12, 2
        // Predicated region
        $region41: #{tpu_custom_call.1} parent=39 // pred_check
          %p1587 = pneg %p125
        $region42: #{tpu_custom_call.1} parent=39 // pred_check_branch
          %1589 = sbr.rel (%p1587) target = $region44
        $region43: #{tpu_custom_call.1} parent=39 // pred_region
          %s1590 = sand.u32 %s110, 1
          %s1591 = scalar_lea.sflag [#allocation4], %s1590
          %s1592 = sand.u32 %s110, 1
          %s1593 = smul.addr %s1592, 128
          %s1594 = scalar_lea.vmem [#allocation3], %s1593
          %1596 = dma.done %s1591, 2048
        $region44: #{tpu_custom_call.1} parent=39 // pred_fallthru
          _
      $region40: #{tpu_custom_call.1} parent=5 // pred_fallthru
        _
    $region6: #{tpu_custom_call.1} parent=1 // loop_footer
      %s16 = sadd.s32 1, %s12
    $region7: #{tpu_custom_call.1} parent=1 // loop_footer_branch
      %11 = sbr.rel target = $region3
    $region8: #{tpu_custom_call.1} parent=1 // loop_exit
      _
    %1597 = vsyncpa [#allocation4], 1
    %s1598 = scalar_lea.sflag [#allocation4], 1
    %1599 = vsyncpa %s1598, 1

</llo_original>
